<compile_context>
chip_gen: v7x
topology: tpu7x:2x2x1
jax: 0.10.0
libtpu: 0.0.40
codegen_flags: <defaults>
</compile_context>

<pallas_src>
import functools

import jax
import jax.numpy as jnp
from jax import lax
from jax.experimental import pallas as pl
from jax.experimental.pallas import tpu as pltpu


def _mha_block_kernel(x_ref, gamma_ref, beta_ref,
                      wq_ref, wk_ref, wv_ref,
                      bq_ref, bk_ref, bv_ref,
                      wo_ref, bo_ref,
                      o_ref, *, num_heads: int, eps: float):
    # x_ref: (1, S, E) block — one batch element; parameters fully VMEM-resident.
    x = x_ref[0].astype(jnp.float32)                         # (S, E)
    S, E = x.shape
    hd = E // num_heads
    scale = 1.0 / float(hd) ** 0.5

    # ---- LayerNorm over the embedding axis (f32 statistics) ----
    mu = jnp.mean(x, axis=-1, keepdims=True)
    var = jnp.mean((x - mu) * (x - mu), axis=-1, keepdims=True)
    y = (x - mu) * lax.rsqrt(var + eps)
    y = y * gamma_ref[...].astype(jnp.float32) + beta_ref[...].astype(jnp.float32)

    # bf16 MXU operands, f32 accumulation. Head axis is a leading batch dimension so the
    # QKV split / attention require no lane-axis slicing and no concatenation.
    y3 = jnp.broadcast_to(y.astype(jnp.bfloat16), (num_heads, S, E))   # (NH, S, E)

    # ---- Head-batched Q/K/V projections: (NH, S, E) @ (NH, E, hd) ----
    q = jnp.einsum('hse,hed->hsd', y3, wq_ref[...], preferred_element_type=jnp.float32)
    k = jnp.einsum('hse,hed->hsd', y3, wk_ref[...], preferred_element_type=jnp.float32)
    v = jnp.einsum('hse,hed->hsd', y3, wv_ref[...], preferred_element_type=jnp.float32)
    # fold the 1/sqrt(hd) score scale into q (S*hd multiplies instead of S*S)
    q = (q + bq_ref[...]) * scale
    k = k + bk_ref[...]
    v = v + bv_ref[...]
    q_b = q.astype(jnp.bfloat16)
    k_b = k.astype(jnp.bfloat16)
    v_b = v.astype(jnp.bfloat16)

    # ---- Head-batched scaled dot-product attention ----
    s = jnp.einsum('hqd,hkd->hqk', q_b, k_b, preferred_element_type=jnp.float32)  # (NH, S, S)
    m = jnp.max(s, axis=-1, keepdims=True)
    p = jnp.exp(s - m)                                         # un-normalized softmax weights
    l = jnp.sum(p, axis=-1, keepdims=True)                     # row sums (f32)

    # (attention dropout: identity in eval mode)

    ctx = jnp.einsum('hqk,hkd->hqd', p.astype(jnp.bfloat16), v_b,
                     preferred_element_type=jnp.float32)       # (NH, S, hd)
    # deferred normalization: single multiply by the approximate reciprocal (EUP slot)
    ctx = ctx * pl.reciprocal(l, approx=True)

    # ---- Out-projection, reduced over heads (replaces the lane-axis concat) ----
    out_h = jnp.einsum('hsd,hde->hse', ctx.astype(jnp.bfloat16), wo_ref[...],
                       preferred_element_type=jnp.float32)     # (NH, S, E)
    out = jnp.sum(out_h, axis=0) + bo_ref[...].astype(jnp.float32)   # (S, E)

    o_ref[0] = out.astype(o_ref.dtype)


def mha_block(x, gamma, beta, wqkv, bqkv, wo, bo, *, num_heads: int, eps: float = 1e-5):
    """x: (B, S, E). gamma/beta: (E,). wqkv: (E, 3E), bqkv: (3E,), wo: (E, E), bo: (E,)."""
    B, S, E = x.shape
    assert E % num_heads == 0, "embed dim must divide by num_heads"
    hd = E // num_heads

    # ---- Host-side repack: head-major, bf16 weights; f32 biases / LN params ----
    def head_major(w):       # (E, E) math-major -> (NH, E, hd); column block h -> head h
        return jnp.transpose(w.reshape(E, num_heads, hd), (1, 0, 2)).astype(jnp.bfloat16)

    wq_h = head_major(wqkv[:, :E])
    wk_h = head_major(wqkv[:, E:2 * E])
    wv_h = head_major(wqkv[:, 2 * E:])
    bq_h = bqkv[:E].reshape(num_heads, 1, hd).astype(jnp.float32)
    bk_h = bqkv[E:2 * E].reshape(num_heads, 1, hd).astype(jnp.float32)
    bv_h = bqkv[2 * E:].reshape(num_heads, 1, hd).astype(jnp.float32)
    wo_h = wo.reshape(num_heads, hd, E).astype(jnp.bfloat16)   # rows are head-major ctx dims
    gamma2 = gamma.reshape(1, E).astype(jnp.float32)
    beta2 = beta.reshape(1, E).astype(jnp.float32)
    bo2 = bo.reshape(1, E).astype(jnp.float32)

    # One batch element per grid step (full sequence needed for self-attention).
    # B >= 2 with "parallel" semantics lets megacore (v7x) shard the batch axis.
    x_spec = pl.BlockSpec((1, S, E), lambda b: (b, 0, 0))

    def resident(arr):        # grid-invariant parameter: same (0,...,0) block every step
        nd = arr.ndim
        return pl.BlockSpec(arr.shape, lambda b, _nd=nd: (0,) * _nd)

    # Advisory cost for XLA's scheduler around the custom call.
    flops = B * (8 * S * E * E + 4 * S * S * E)               # qkv + out proj + attention
    transcendentals = B * num_heads * S * S                   # softmax exp
    bytes_accessed = (2 * B * S * E * 4                       # x in + out (f32)
                      + 4 * E * E * 2                         # q/k/v/o weights (bf16)
                      + 6 * E * 4)                            # biases + gamma/beta (f32)

    out = pl.pallas_call(
        functools.partial(_mha_block_kernel, num_heads=num_heads, eps=eps),
        out_shape=jax.ShapeDtypeStruct((B, S, E), x.dtype),
        grid_spec=pl.GridSpec(
            grid=(B,),
            in_specs=[
                x_spec,                                  # x (one batch element per step)
                resident(gamma2), resident(beta2),       # LayerNorm params
                resident(wq_h), resident(wk_h), resident(wv_h),   # head-major QKV weights
                resident(bq_h), resident(bk_h), resident(bv_h),   # head-major QKV biases
                resident(wo_h), resident(bo2),           # out-projection
            ],
            out_specs=x_spec,
        ),
        compiler_params=pltpu.CompilerParams(
            dimension_semantics=("parallel",),
            # Explicit VMEM budget: above the 16/32 MiB scoped defaults (v5e/v6e-v7x),
            # below v7x's 64 MiB physical ceiling. Re-tune for production embed dims.
            vmem_limit_bytes=48 * 1024 * 1024,
        ),
        cost_estimate=pl.CostEstimate(
            flops=flops, transcendentals=transcendentals, bytes_accessed=bytes_accessed),
    )(x, gamma2, beta2, wq_h, wk_h, wv_h, bq_h, bk_h, bv_h, wo_h, bo2)

    return out


def _reference(x, gamma, beta, wqkv, bqkv, wo, bo, num_heads, eps=1e-5):
    B, S, E = x.shape
    hd = E // num_heads
    xf = x.astype(jnp.float32)
    mu = jnp.mean(xf, axis=-1, keepdims=True)
    var = jnp.mean((xf - mu) ** 2, axis=-1, keepdims=True)
    y = (xf - mu) * lax.rsqrt(var + eps) * gamma + beta
    qkv = y @ wqkv + bqkv                                      # (B, S, 3E)
    q, k, v = jnp.split(qkv, 3, axis=-1)
    q = q.reshape(B, S, num_heads, hd).transpose(0, 2, 1, 3)
    k = k.reshape(B, S, num_heads, hd).transpose(0, 2, 1, 3)
    v = v.reshape(B, S, num_heads, hd).transpose(0, 2, 1, 3)
    scores = jnp.einsum('bhqd,bhkd->bhqk', q, k) / jnp.sqrt(jnp.float32(hd))
    p = jax.nn.softmax(scores, axis=-1)
    ctx = jnp.einsum('bhqk,bhkd->bhqd', p, v)
    ctx = ctx.transpose(0, 2, 1, 3).reshape(B, S, E)
    return (ctx @ wo + bo).astype(x.dtype)


if __name__ == "__main__":
    # Small shapes consistent with the module: embd_dim=32, num_heads=4, seq=8, batch=2.
    B, S, E, NH = 2, 8, 32, 4
    key = jax.random.PRNGKey(0)
    kx, kg, kb, kw, kbq, kwo, kbo = jax.random.split(key, 7)

    x = jax.random.normal(kx, (B, S, E), dtype=jnp.float32)

    # Deterministic synthetic parameters (math-major layout, i.e. torch weight.T).
    gamma = 1.0 + 0.1 * jax.random.normal(kg, (E,), dtype=jnp.float32)
    beta = 0.1 * jax.random.normal(kb, (E,), dtype=jnp.float32)
    wqkv = 0.1 * jax.random.normal(kw, (E, 3 * E), dtype=jnp.float32)
    bqkv = 0.05 * jax.random.normal(kbq, (3 * E,), dtype=jnp.float32)
    wo = 0.1 * jax.random.normal(kwo, (E, E), dtype=jnp.float32)
    bo = 0.05 * jax.random.normal(kbo, (E,), dtype=jnp.float32)

    out = mha_block(x, gamma, beta, wqkv, bqkv, wo, bo, num_heads=NH)
    out = jax.block_until_ready(out)

    ref = _reference(x, gamma, beta, wqkv, bqkv, wo, bo, num_heads=NH)
    assert out.shape == (B, S, E)
    # bf16 MXU operands (f32 accumulation) => slightly looser tolerance than a pure-f32 path.
    assert jnp.allclose(out, ref, atol=3e-2, rtol=3e-2), "mismatch vs reference"

    print("KERNEL_OK")
</pallas_src>

<mosaic_0001>
module attributes {stable_mosaic.version = 11 : i64} {
  func.func @_mha_block_kernel(%arg0: i32, %arg1: memref<1x8x32xf32, #tpu.memory_space<vmem>>, %arg2: memref<1x32xf32, #tpu.memory_space<vmem>>, %arg3: memref<1x32xf32, #tpu.memory_space<vmem>>, %arg4: memref<4x32x8xbf16, #tpu.memory_space<vmem>>, %arg5: memref<4x32x8xbf16, #tpu.memory_space<vmem>>, %arg6: memref<4x32x8xbf16, #tpu.memory_space<vmem>>, %arg7: memref<4x1x8xf32, #tpu.memory_space<vmem>>, %arg8: memref<4x1x8xf32, #tpu.memory_space<vmem>>, %arg9: memref<4x1x8xf32, #tpu.memory_space<vmem>>, %arg10: memref<4x8x32xbf16, #tpu.memory_space<vmem>>, %arg11: memref<1x32xf32, #tpu.memory_space<vmem>>, %arg12: memref<1x8x32xf32, #tpu.memory_space<vmem>>) attributes {dimension_semantics = [#tpu.dimension_semantics<parallel>], iteration_bounds = array<i64: 2>, scalar_prefetch = 0 : i64, scratch_operands = 0 : i64, tpu.core_type = #tpu.core_type<tc>, window_params = [{transform_indices = @transform_0, window_bounds = array<i64: 1, 8, 32>}, {pipeline_mode = #tpu.pipeline_mode<synchronous>, transform_indices = @transform_1, window_bounds = array<i64: 1, 32>}, {pipeline_mode = #tpu.pipeline_mode<synchronous>, transform_indices = @transform_2, window_bounds = array<i64: 1, 32>}, {pipeline_mode = #tpu.pipeline_mode<synchronous>, transform_indices = @transform_3, window_bounds = array<i64: 4, 32, 8>}, {pipeline_mode = #tpu.pipeline_mode<synchronous>, transform_indices = @transform_4, window_bounds = array<i64: 4, 32, 8>}, {pipeline_mode = #tpu.pipeline_mode<synchronous>, transform_indices = @transform_5, window_bounds = array<i64: 4, 32, 8>}, {pipeline_mode = #tpu.pipeline_mode<synchronous>, transform_indices = @transform_6, window_bounds = array<i64: 4, 1, 8>}, {pipeline_mode = #tpu.pipeline_mode<synchronous>, transform_indices = @transform_7, window_bounds = array<i64: 4, 1, 8>}, {pipeline_mode = #tpu.pipeline_mode<synchronous>, transform_indices = @transform_8, window_bounds = array<i64: 4, 1, 8>}, {pipeline_mode = #tpu.pipeline_mode<synchronous>, transform_indices = @transform_9, window_bounds = array<i64: 4, 8, 32>}, {pipeline_mode = #tpu.pipeline_mode<synchronous>, transform_indices = @transform_10, window_bounds = array<i64: 1, 32>}, {transform_indices = @transform_11, window_bounds = array<i64: 1, 8, 32>}]} {
    %c0 = arith.constant 0 : index
    %c0_0 = arith.constant 0 : index
    %c0_1 = arith.constant 0 : index
    %0 = vector.load %arg1[%c0, %c0_0, %c0_1] : memref<1x8x32xf32, #tpu.memory_space<vmem>>, vector<1x8x32xf32>
    %1 = vector.shape_cast %0 : vector<1x8x32xf32> to vector<8x32xf32>
    %cst = arith.constant dense<0.000000e+00> : vector<8xf32>
    %2 = vector.multi_reduction <add>, %1, %cst [1] : vector<8x32xf32> to vector<8xf32>
    %3 = vector.shape_cast %2 : vector<8xf32> to vector<8x1xf32>
    %cst_2 = arith.constant 3.200000e+01 : f32
    %4 = vector.broadcast %cst_2 : f32 to vector<8x1xf32>
    %5 = arith.divf %3, %4 : vector<8x1xf32>
    %6 = vector.broadcast %5 : vector<8x1xf32> to vector<8x32xf32>
    %7 = arith.subf %1, %6 : vector<8x32xf32>
    %8 = vector.broadcast %5 : vector<8x1xf32> to vector<8x32xf32>
    %9 = arith.subf %1, %8 : vector<8x32xf32>
    %10 = arith.mulf %7, %9 : vector<8x32xf32>
    %cst_3 = arith.constant dense<0.000000e+00> : vector<8xf32>
    %11 = vector.multi_reduction <add>, %10, %cst_3 [1] : vector<8x32xf32> to vector<8xf32>
    %12 = vector.shape_cast %11 : vector<8xf32> to vector<8x1xf32>
    %cst_4 = arith.constant 3.200000e+01 : f32
    %13 = vector.broadcast %cst_4 : f32 to vector<8x1xf32>
    %14 = arith.divf %12, %13 : vector<8x1xf32>
    %15 = vector.broadcast %5 : vector<8x1xf32> to vector<8x32xf32>
    %16 = arith.subf %1, %15 : vector<8x32xf32>
    %cst_5 = arith.constant 9.99999974E-6 : f32
    %17 = vector.broadcast %cst_5 : f32 to vector<8x1xf32>
    %18 = arith.addf %14, %17 : vector<8x1xf32>
    %19 = math.rsqrt %18 : vector<8x1xf32>
    %20 = vector.broadcast %19 : vector<8x1xf32> to vector<8x32xf32>
    %21 = arith.mulf %16, %20 : vector<8x32xf32>
    %c0_6 = arith.constant 0 : index
    %c0_7 = arith.constant 0 : index
    %22 = vector.load %arg2[%c0_6, %c0_7] : memref<1x32xf32, #tpu.memory_space<vmem>>, vector<1x32xf32>
    %23 = vector.broadcast %22 : vector<1x32xf32> to vector<8x32xf32>
    %24 = arith.mulf %21, %23 : vector<8x32xf32>
    %c0_8 = arith.constant 0 : index
    %c0_9 = arith.constant 0 : index
    %25 = vector.load %arg3[%c0_8, %c0_9] : memref<1x32xf32, #tpu.memory_space<vmem>>, vector<1x32xf32>
    %26 = vector.broadcast %25 : vector<1x32xf32> to vector<8x32xf32>
    %27 = arith.addf %24, %26 : vector<8x32xf32>
    %28 = arith.truncf %27 : vector<8x32xf32> to vector<8x32xbf16>
    %29 = vector.shape_cast %28 : vector<8x32xbf16> to vector<1x8x32xbf16>
    %30 = vector.broadcast %29 : vector<1x8x32xbf16> to vector<4x8x32xbf16>
    %c0_10 = arith.constant 0 : index
    %c0_11 = arith.constant 0 : index
    %c0_12 = arith.constant 0 : index
    %31 = vector.load %arg4[%c0_10, %c0_11, %c0_12] : memref<4x32x8xbf16, #tpu.memory_space<vmem>>, vector<4x32x8xbf16>
    "tpu.trace_start"() <{level = 10 : i32, message = "hse,hed->hsd"}> : () -> ()
    %cst_13 = arith.constant dense<0.000000e+00> : vector<4x8x8xf32>
    %32 = tpu.matmul %30, %31, %cst_13 {dimension_numbers = #tpu.dot_dimension_numbers<[2], [1], [1], [2], [0, 0, 0, 1, 1, 2], [0], [0]>} : vector<4x8x32xbf16>, vector<4x32x8xbf16>, vector<4x8x8xf32> -> vector<4x8x8xf32>
    "tpu.trace_stop"() : () -> ()
    %c0_14 = arith.constant 0 : index
    %c0_15 = arith.constant 0 : index
    %c0_16 = arith.constant 0 : index
    %33 = vector.load %arg5[%c0_14, %c0_15, %c0_16] : memref<4x32x8xbf16, #tpu.memory_space<vmem>>, vector<4x32x8xbf16>
    "tpu.trace_start"() <{level = 10 : i32, message = "hse,hed->hsd"}> : () -> ()
    %cst_17 = arith.constant dense<0.000000e+00> : vector<4x8x8xf32>
    %34 = tpu.matmul %30, %33, %cst_17 {dimension_numbers = #tpu.dot_dimension_numbers<[2], [1], [1], [2], [0, 0, 0, 1, 1, 2], [0], [0]>} : vector<4x8x32xbf16>, vector<4x32x8xbf16>, vector<4x8x8xf32> -> vector<4x8x8xf32>
    "tpu.trace_stop"() : () -> ()
    %c0_18 = arith.constant 0 : index
    %c0_19 = arith.constant 0 : index
    %c0_20 = arith.constant 0 : index
    %35 = vector.load %arg6[%c0_18, %c0_19, %c0_20] : memref<4x32x8xbf16, #tpu.memory_space<vmem>>, vector<4x32x8xbf16>
    "tpu.trace_start"() <{level = 10 : i32, message = "hse,hed->hsd"}> : () -> ()
    %cst_21 = arith.constant dense<0.000000e+00> : vector<4x8x8xf32>
    %36 = tpu.matmul %30, %35, %cst_21 {dimension_numbers = #tpu.dot_dimension_numbers<[2], [1], [1], [2], [0, 0, 0, 1, 1, 2], [0], [0]>} : vector<4x8x32xbf16>, vector<4x32x8xbf16>, vector<4x8x8xf32> -> vector<4x8x8xf32>
    "tpu.trace_stop"() : () -> ()
    %c0_22 = arith.constant 0 : index
    %c0_23 = arith.constant 0 : index
    %c0_24 = arith.constant 0 : index
    %37 = vector.load %arg7[%c0_22, %c0_23, %c0_24] : memref<4x1x8xf32, #tpu.memory_space<vmem>>, vector<4x1x8xf32>
    %38 = vector.broadcast %37 : vector<4x1x8xf32> to vector<4x8x8xf32>
    %39 = arith.addf %32, %38 : vector<4x8x8xf32>
    %cst_25 = arith.constant 0.353553385 : f32
    %40 = vector.broadcast %cst_25 : f32 to vector<4x8x8xf32>
    %41 = arith.mulf %39, %40 : vector<4x8x8xf32>
    %c0_26 = arith.constant 0 : index
    %c0_27 = arith.constant 0 : index
    %c0_28 = arith.constant 0 : index
    %42 = vector.load %arg8[%c0_26, %c0_27, %c0_28] : memref<4x1x8xf32, #tpu.memory_space<vmem>>, vector<4x1x8xf32>
    %43 = vector.broadcast %42 : vector<4x1x8xf32> to vector<4x8x8xf32>
    %44 = arith.addf %34, %43 : vector<4x8x8xf32>
    %c0_29 = arith.constant 0 : index
    %c0_30 = arith.constant 0 : index
    %c0_31 = arith.constant 0 : index
    %45 = vector.load %arg9[%c0_29, %c0_30, %c0_31] : memref<4x1x8xf32, #tpu.memory_space<vmem>>, vector<4x1x8xf32>
    %46 = vector.broadcast %45 : vector<4x1x8xf32> to vector<4x8x8xf32>
    %47 = arith.addf %36, %46 : vector<4x8x8xf32>
    %48 = arith.truncf %41 : vector<4x8x8xf32> to vector<4x8x8xbf16>
    %49 = arith.truncf %44 : vector<4x8x8xf32> to vector<4x8x8xbf16>
    %50 = arith.truncf %47 : vector<4x8x8xf32> to vector<4x8x8xbf16>
    "tpu.trace_start"() <{level = 10 : i32, message = "hqd,hkd->hqk"}> : () -> ()
    %cst_32 = arith.constant dense<0.000000e+00> : vector<4x8x8xf32>
    %51 = tpu.matmul %48, %49, %cst_32 {dimension_numbers = #tpu.dot_dimension_numbers<[2], [2], [1], [1], [0, 0, 0, 1, 1, 1], [0], [0]>} : vector<4x8x8xbf16>, vector<4x8x8xbf16>, vector<4x8x8xf32> -> vector<4x8x8xf32>
    "tpu.trace_stop"() : () -> ()
    %cst_33 = arith.constant dense<0xFF800000> : vector<4x8xf32>
    %52 = vector.multi_reduction <maximumf>, %51, %cst_33 [2] : vector<4x8x8xf32> to vector<4x8xf32>
    %53 = vector.shape_cast %52 : vector<4x8xf32> to vector<4x8x1xf32>
    %54 = vector.broadcast %53 : vector<4x8x1xf32> to vector<4x8x8xf32>
    %55 = arith.subf %51, %54 : vector<4x8x8xf32>
    %56 = math.exp %55 : vector<4x8x8xf32>
    %cst_34 = arith.constant dense<0.000000e+00> : vector<4x8xf32>
    %57 = vector.multi_reduction <add>, %56, %cst_34 [2] : vector<4x8x8xf32> to vector<4x8xf32>
    %58 = vector.shape_cast %57 : vector<4x8xf32> to vector<4x8x1xf32>
    %59 = arith.truncf %56 : vector<4x8x8xf32> to vector<4x8x8xbf16>
    "tpu.trace_start"() <{level = 10 : i32, message = "hqk,hkd->hqd"}> : () -> ()
    %cst_35 = arith.constant dense<0.000000e+00> : vector<4x8x8xf32>
    %60 = tpu.matmul %59, %50, %cst_35 {dimension_numbers = #tpu.dot_dimension_numbers<[2], [1], [1], [2], [0, 0, 0, 1, 1, 2], [0], [0]>} : vector<4x8x8xbf16>, vector<4x8x8xbf16>, vector<4x8x8xf32> -> vector<4x8x8xf32>
    "tpu.trace_stop"() : () -> ()
    %61 = tpu.reciprocal %58 {approx = true} : vector<4x8x1xf32> -> vector<4x8x1xf32>
    %62 = vector.broadcast %61 : vector<4x8x1xf32> to vector<4x8x8xf32>
    %63 = arith.mulf %60, %62 : vector<4x8x8xf32>
    %64 = arith.truncf %63 : vector<4x8x8xf32> to vector<4x8x8xbf16>
    %c0_36 = arith.constant 0 : index
    %c0_37 = arith.constant 0 : index
    %c0_38 = arith.constant 0 : index
    %65 = vector.load %arg10[%c0_36, %c0_37, %c0_38] : memref<4x8x32xbf16, #tpu.memory_space<vmem>>, vector<4x8x32xbf16>
    "tpu.trace_start"() <{level = 10 : i32, message = "hsd,hde->hse"}> : () -> ()
    %cst_39 = arith.constant dense<0.000000e+00> : vector<4x8x32xf32>
    %66 = tpu.matmul %64, %65, %cst_39 {dimension_numbers = #tpu.dot_dimension_numbers<[2], [1], [1], [2], [0, 0, 0, 1, 1, 2], [0], [0]>} : vector<4x8x8xbf16>, vector<4x8x32xbf16>, vector<4x8x32xf32> -> vector<4x8x32xf32>
    "tpu.trace_stop"() : () -> ()
    %cst_40 = arith.constant dense<0.000000e+00> : vector<8x32xf32>
    %67 = vector.multi_reduction <add>, %66, %cst_40 [0] : vector<4x8x32xf32> to vector<8x32xf32>
    %c0_41 = arith.constant 0 : index
    %c0_42 = arith.constant 0 : index
    %68 = vector.load %arg11[%c0_41, %c0_42] : memref<1x32xf32, #tpu.memory_space<vmem>>, vector<1x32xf32>
    %69 = vector.broadcast %68 : vector<1x32xf32> to vector<8x32xf32>
    %70 = arith.addf %67, %69 : vector<8x32xf32>
    %c0_43 = arith.constant 0 : index
    %c0_44 = arith.constant 0 : index
    %c0_45 = arith.constant 0 : index
    %71 = vector.load %arg12[%c0_43, %c0_44, %c0_45] : memref<1x8x32xf32, #tpu.memory_space<vmem>>, vector<1x8x32xf32>
    %72 = vector.shape_cast %71 : vector<1x8x32xf32> to vector<8x32xf32>
    %73 = vector.shape_cast %70 : vector<8x32xf32> to vector<1x8x32xf32>
    tpu.vector_store %arg12[%c0_43, %c0_44, %c0_45], %73 {strides = array<i32>} : memref<1x8x32xf32, #tpu.memory_space<vmem>>, vector<1x8x32xf32>,
    return
  }
  func.func @transform_0(%arg0: i32) -> (i32, i32, i32) {
    %c0_i32 = arith.constant 0 : i32
    %c0_i32_0 = arith.constant 0 : i32
    %c0_i32_1 = arith.constant 0 : i32
    return %arg0, %c0_i32, %c0_i32_0 : i32, i32, i32
  }
  func.func @transform_1(%arg0: i32) -> (i32, i32) {
    %c0_i32 = arith.constant 0 : i32
    %c0_i32_0 = arith.constant 0 : i32
    %c0_i32_1 = arith.constant 0 : i32
    return %c0_i32, %c0_i32_0 : i32, i32
  }
  func.func @transform_2(%arg0: i32) -> (i32, i32) {
    %c0_i32 = arith.constant 0 : i32
    %c0_i32_0 = arith.constant 0 : i32
    %c0_i32_1 = arith.constant 0 : i32
    return %c0_i32, %c0_i32_0 : i32, i32
  }
  func.func @transform_3(%arg0: i32) -> (i32, i32, i32) {
    %c0_i32 = arith.constant 0 : i32
    %c0_i32_0 = arith.constant 0 : i32
    %c0_i32_1 = arith.constant 0 : i32
    %c0_i32_2 = arith.constant 0 : i32
    return %c0_i32, %c0_i32_0, %c0_i32_1 : i32, i32, i32
  }
  func.func @transform_4(%arg0: i32) -> (i32, i32, i32) {
    %c0_i32 = arith.constant 0 : i32
    %c0_i32_0 = arith.constant 0 : i32
    %c0_i32_1 = arith.constant 0 : i32
    %c0_i32_2 = arith.constant 0 : i32
    return %c0_i32, %c0_i32_0, %c0_i32_1 : i32, i32, i32
  }
  func.func @transform_5(%arg0: i32) -> (i32, i32, i32) {
    %c0_i32 = arith.constant 0 : i32
    %c0_i32_0 = arith.constant 0 : i32
    %c0_i32_1 = arith.constant 0 : i32
    %c0_i32_2 = arith.constant 0 : i32
    return %c0_i32, %c0_i32_0, %c0_i32_1 : i32, i32, i32
  }
  func.func @transform_6(%arg0: i32) -> (i32, i32, i32) {
    %c0_i32 = arith.constant 0 : i32
    %c0_i32_0 = arith.constant 0 : i32
    %c0_i32_1 = arith.constant 0 : i32
    %c0_i32_2 = arith.constant 0 : i32
    return %c0_i32, %c0_i32_0, %c0_i32_1 : i32, i32, i32
  }
  func.func @transform_7(%arg0: i32) -> (i32, i32, i32) {
    %c0_i32 = arith.constant 0 : i32
    %c0_i32_0 = arith.constant 0 : i32
    %c0_i32_1 = arith.constant 0 : i32
    %c0_i32_2 = arith.constant 0 : i32
    return %c0_i32, %c0_i32_0, %c0_i32_1 : i32, i32, i32
  }
  func.func @transform_8(%arg0: i32) -> (i32, i32, i32) {
    %c0_i32 = arith.constant 0 : i32
    %c0_i32_0 = arith.constant 0 : i32
    %c0_i32_1 = arith.constant 0 : i32
    %c0_i32_2 = arith.constant 0 : i32
    return %c0_i32, %c0_i32_0, %c0_i32_1 : i32, i32, i32
  }
  func.func @transform_9(%arg0: i32) -> (i32, i32, i32) {
    %c0_i32 = arith.constant 0 : i32
    %c0_i32_0 = arith.constant 0 : i32
    %c0_i32_1 = arith.constant 0 : i32
    %c0_i32_2 = arith.constant 0 : i32
    return %c0_i32, %c0_i32_0, %c0_i32_1 : i32, i32, i32
  }
  func.func @transform_10(%arg0: i32) -> (i32, i32) {
    %c0_i32 = arith.constant 0 : i32
    %c0_i32_0 = arith.constant 0 : i32
    %c0_i32_1 = arith.constant 0 : i32
    return %c0_i32, %c0_i32_0 : i32, i32
  }
  func.func @transform_11(%arg0: i32) -> (i32, i32, i32) {
    %c0_i32 = arith.constant 0 : i32
    %c0_i32_0 = arith.constant 0 : i32
    %c0_i32_1 = arith.constant 0 : i32
    return %arg0, %c0_i32, %c0_i32_0 : i32, i32, i32
  }
}

</mosaic_0001>

<llo_original>
// kernel: tpu_custom_call.1
$region0: #{tpu_custom_call.1}
  #allocation0 [shape = 'u32[]', space=smem, size = 0x4, offset = 0x4, fixed_abs, tag = 'smem constant byte address 0x4 - core index']
  #allocation1 [shape = 'u32[144,128]{1,0:T(1,128)}', space=vmem, size = 0x12000, scoped, tag = 'internal scratch']
  %s0 = inlined_call_operand.vmem [shape: f32[2,8,32], index: 0, kind: input, shape index: {}]
  %s1 = inlined_call_operand.vmem [shape: f32[1,32], index: 1, kind: input, shape index: {}]
  %s2 = inlined_call_operand.vmem [shape: f32[1,32], index: 2, kind: input, shape index: {}]
  %s3 = inlined_call_operand.vmem [shape: bf16[4,32,8], index: 3, kind: input, shape index: {}]
  %s4 = inlined_call_operand.vmem [shape: bf16[4,32,8], index: 4, kind: input, shape index: {}]
  %s5 = inlined_call_operand.vmem [shape: bf16[4,32,8], index: 5, kind: input, shape index: {}]
  %s6 = inlined_call_operand.vmem [shape: f32[4,1,8], index: 6, kind: input, shape index: {}]
  %s7 = inlined_call_operand.vmem [shape: f32[4,1,8], index: 7, kind: input, shape index: {}]
  %s8 = inlined_call_operand.vmem [shape: f32[4,1,8], index: 8, kind: input, shape index: {}]
  %s9 = inlined_call_operand.vmem [shape: bf16[4,8,32], index: 9, kind: input, shape index: {}]
  %s10 = inlined_call_operand.vmem [shape: f32[1,32], index: 10, kind: input, shape index: {}]
  %s11 = inlined_call_operand.hbm [shape: f32[2,8,32], index: 11, kind: output, shape index: {}]
  %s12 = sld [smem:[#allocation0]]
  $region77: #{tpu_custom_call.1} parent=0
    _
  %s14 = ssub.s32 1, %s12
  %s15 = scalar_select 0, %s14, %s12
  $region1: #{tpu_custom_call.1} parent=0
    #allocation2 [shape = 'u8[8192]{0}', space=vmem, size = 0x2000, scoped, tag = 'output window, operand 0']
    #allocation3 [shape = 's32[2]{0}', space=sflag, size = 0x8, scoped, tag = 'scoped memory for tpu_custom_call.1']
    %16 = vsyncpa [#allocation3], 0
    %s17 = scalar_lea.sflag [#allocation3], 1
    %18 = vsyncpa %s17, 0
    loop: start=0, step=1, limit=4
    $region2: #{tpu_custom_call.1} parent=1 // loop_pre_header
      _
    $region3: #{tpu_custom_call.1} parent=1 // loop_header
      %s20 = sphi 0, %s24
      %p21 = scmp.ge.s32.totalorder %s20, 4
      %s30 = sphi 0, %s32
      %s33 = sphi 0, %s30
      %s34 = sphi 0, %s33
      %s50 = sphi 0, %s34
      %s54 = sphi 0, %s54
      %s56 = sphi 0, %s54
      %s57 = sphi 0, %s56
      %s71 = sphi 0, %s57
      %s75 = sphi 0, %s75
      %s77 = sphi 0, %s75
      %s78 = sphi 0, %s77
      %s92 = sphi 0, %s78
      %s96 = sphi 0, %s96
      %s98 = sphi 0, %s96
      %s99 = sphi 0, %s98
      %s113 = sphi 0, %s99
      %s117 = sphi 0, %s117
      %s119 = sphi 0, %s117
      %s120 = sphi 0, %s119
      %s134 = sphi 0, %s120
      %s138 = sphi 0, %s138
      %s140 = sphi 0, %s138
      %s141 = sphi 0, %s140
      %s155 = sphi 0, %s141
      %s159 = sphi 0, %s159
      %s161 = sphi 0, %s159
      %s162 = sphi 0, %s161
      %s176 = sphi 0, %s162
      %s180 = sphi 0, %s180
      %s182 = sphi 0, %s180
      %s183 = sphi 0, %s182
      %s197 = sphi 0, %s183
      %s201 = sphi 0, %s201
      %s203 = sphi 0, %s201
      %s204 = sphi 0, %s203
      %s218 = sphi 0, %s204
      %s222 = sphi 0, %s222
      %s224 = sphi 0, %s222
      %s225 = sphi 0, %s224
      %s239 = sphi 0, %s225
      %s243 = sphi 0, %s243
      %s245 = sphi 0, %s243
      %s246 = sphi 0, %s245
      %s260 = sphi 0, %s246
      %s266 = sphi 0, %s268
      %s269 = sphi 0, %s266
      %s270 = sphi 0, %s269
      %s286 = sphi 0, %s270
    $region4: #{tpu_custom_call.1} parent=1 // loop_header_branch
      %23 = sbr.rel (%p21) target = $region8
    $region5: #{tpu_custom_call.1} parent=1 // loop_body
      %s25 = ssub.s32 %s20, 1
      %s26 = ssub.s32 %s20, 2
      %s27 = sadd.s32 %s20, 1
      %s28 = ssub.s32 %s20, %s27
      %p29 = scmp.eq.s32.totalorder %s28, 0
      %s31 = sadd.s32 %s30, 1
      %s32 = scalar_select %p29, %s30, %s31
      %p35 = pneg %p29
      %p36 = scmp.eq.s32.totalorder %s20, 1
      %p37 = por %p35, %p36
      %p38 = scmp.ne.s32.totalorder %s30, %s33
      %p39 = scmp.eq.s32.totalorder %s20, 0
      %p40 = por %p38, %p39
      %p41 = scmp.ne.s32.totalorder %s30, %s33
      %p42 = scmp.eq.s32.totalorder %s25, 1
      %p43 = por %p41, %p42
      %p44 = scmp.ne.s32.totalorder %s33, %s34
      %p45 = scmp.eq.s32.totalorder %s25, 0
      %p46 = por %p44, %p45
      %p47 = scmp.ne.s32.totalorder %s33, %s34
      %p48 = scmp.eq.s32.totalorder %s26, 1
      %p49 = por %p47, %p48
      %p51 = scmp.ne.s32.totalorder %s34, %s50
      %p52 = scmp.eq.s32.totalorder %s26, 0
      %p53 = por %p51, %p52
      %s55 = sadd.s32 %s54, 1
      %p58 = scmp.eq.s32.totalorder %s20, 1
      %p59 = scmp.ne.s32.totalorder %s54, %s56
      %p60 = scmp.eq.s32.totalorder %s20, 0
      %p61 = por %p59, %p60
      %p62 = scmp.ne.s32.totalorder %s54, %s56
      %p63 = scmp.eq.s32.totalorder %s25, 1
      %p64 = por %p62, %p63
      %p65 = scmp.ne.s32.totalorder %s56, %s57
      %p66 = scmp.eq.s32.totalorder %s25, 0
      %p67 = por %p65, %p66
      %p68 = scmp.ne.s32.totalorder %s56, %s57
      %p69 = scmp.eq.s32.totalorder %s26, 1
      %p70 = por %p68, %p69
      %p72 = scmp.ne.s32.totalorder %s57, %s71
      %p73 = scmp.eq.s32.totalorder %s26, 0
      %p74 = por %p72, %p73
      %s76 = sadd.s32 %s75, 1
      %p79 = scmp.eq.s32.totalorder %s20, 1
      %p80 = scmp.ne.s32.totalorder %s75, %s77
      %p81 = scmp.eq.s32.totalorder %s20, 0
      %p82 = por %p80, %p81
      %p83 = scmp.ne.s32.totalorder %s75, %s77
      %p84 = scmp.eq.s32.totalorder %s25, 1
      %p85 = por %p83, %p84
      %p86 = scmp.ne.s32.totalorder %s77, %s78
      %p87 = scmp.eq.s32.totalorder %s25, 0
      %p88 = por %p86, %p87
      %p89 = scmp.ne.s32.totalorder %s77, %s78
      %p90 = scmp.eq.s32.totalorder %s26, 1
      %p91 = por %p89, %p90
      %p93 = scmp.ne.s32.totalorder %s78, %s92
      %p94 = scmp.eq.s32.totalorder %s26, 0
      %p95 = por %p93, %p94
      %s97 = sadd.s32 %s96, 1
      %p100 = scmp.eq.s32.totalorder %s20, 1
      %p101 = scmp.ne.s32.totalorder %s96, %s98
      %p102 = scmp.eq.s32.totalorder %s20, 0
      %p103 = por %p101, %p102
      %p104 = scmp.ne.s32.totalorder %s96, %s98
      %p105 = scmp.eq.s32.totalorder %s25, 1
      %p106 = por %p104, %p105
      %p107 = scmp.ne.s32.totalorder %s98, %s99
      %p108 = scmp.eq.s32.totalorder %s25, 0
      %p109 = por %p107, %p108
      %p110 = scmp.ne.s32.totalorder %s98, %s99
      %p111 = scmp.eq.s32.totalorder %s26, 1
      %p112 = por %p110, %p111
      %p114 = scmp.ne.s32.totalorder %s99, %s113
      %p115 = scmp.eq.s32.totalorder %s26, 0
      %p116 = por %p114, %p115
      %s118 = sadd.s32 %s117, 1
      %p121 = scmp.eq.s32.totalorder %s20, 1
      %p122 = scmp.ne.s32.totalorder %s117, %s119
      %p123 = scmp.eq.s32.totalorder %s20, 0
      %p124 = por %p122, %p123
      %p125 = scmp.ne.s32.totalorder %s117, %s119
      %p126 = scmp.eq.s32.totalorder %s25, 1
      %p127 = por %p125, %p126
      %p128 = scmp.ne.s32.totalorder %s119, %s120
      %p129 = scmp.eq.s32.totalorder %s25, 0
      %p130 = por %p128, %p129
      %p131 = scmp.ne.s32.totalorder %s119, %s120
      %p132 = scmp.eq.s32.totalorder %s26, 1
      %p133 = por %p131, %p132
      %p135 = scmp.ne.s32.totalorder %s120, %s134
      %p136 = scmp.eq.s32.totalorder %s26, 0
      %p137 = por %p135, %p136
      %s139 = sadd.s32 %s138, 1
      %p142 = scmp.eq.s32.totalorder %s20, 1
      %p143 = scmp.ne.s32.totalorder %s138, %s140
      %p144 = scmp.eq.s32.totalorder %s20, 0
      %p145 = por %p143, %p144
      %p146 = scmp.ne.s32.totalorder %s138, %s140
      %p147 = scmp.eq.s32.totalorder %s25, 1
      %p148 = por %p146, %p147
      %p149 = scmp.ne.s32.totalorder %s140, %s141
      %p150 = scmp.eq.s32.totalorder %s25, 0
      %p151 = por %p149, %p150
      %p152 = scmp.ne.s32.totalorder %s140, %s141
      %p153 = scmp.eq.s32.totalorder %s26, 1
      %p154 = por %p152, %p153
      %p156 = scmp.ne.s32.totalorder %s141, %s155
      %p157 = scmp.eq.s32.totalorder %s26, 0
      %p158 = por %p156, %p157
      %s160 = sadd.s32 %s159, 1
      %p163 = scmp.eq.s32.totalorder %s20, 1
      %p164 = scmp.ne.s32.totalorder %s159, %s161
      %p165 = scmp.eq.s32.totalorder %s20, 0
      %p166 = por %p164, %p165
      %p167 = scmp.ne.s32.totalorder %s159, %s161
      %p168 = scmp.eq.s32.totalorder %s25, 1
      %p169 = por %p167, %p168
      %p170 = scmp.ne.s32.totalorder %s161, %s162
      %p171 = scmp.eq.s32.totalorder %s25, 0
      %p172 = por %p170, %p171
      %p173 = scmp.ne.s32.totalorder %s161, %s162
      %p174 = scmp.eq.s32.totalorder %s26, 1
      %p175 = por %p173, %p174
      %p177 = scmp.ne.s32.totalorder %s162, %s176
      %p178 = scmp.eq.s32.totalorder %s26, 0
      %p179 = por %p177, %p178
      %s181 = sadd.s32 %s180, 1
      %p184 = scmp.eq.s32.totalorder %s20, 1
      %p185 = scmp.ne.s32.totalorder %s180, %s182
      %p186 = scmp.eq.s32.totalorder %s20, 0
      %p187 = por %p185, %p186
      %p188 = scmp.ne.s32.totalorder %s180, %s182
      %p189 = scmp.eq.s32.totalorder %s25, 1
      %p190 = por %p188, %p189
      %p191 = scmp.ne.s32.totalorder %s182, %s183
      %p192 = scmp.eq.s32.totalorder %s25, 0
      %p193 = por %p191, %p192
      %p194 = scmp.ne.s32.totalorder %s182, %s183
      %p195 = scmp.eq.s32.totalorder %s26, 1
      %p196 = por %p194, %p195
      %p198 = scmp.ne.s32.totalorder %s183, %s197
      %p199 = scmp.eq.s32.totalorder %s26, 0
      %p200 = por %p198, %p199
      %s202 = sadd.s32 %s201, 1
      %p205 = scmp.eq.s32.totalorder %s20, 1
      %p206 = scmp.ne.s32.totalorder %s201, %s203
      %p207 = scmp.eq.s32.totalorder %s20, 0
      %p208 = por %p206, %p207
      %p209 = scmp.ne.s32.totalorder %s201, %s203
      %p210 = scmp.eq.s32.totalorder %s25, 1
      %p211 = por %p209, %p210
      %p212 = scmp.ne.s32.totalorder %s203, %s204
      %p213 = scmp.eq.s32.totalorder %s25, 0
      %p214 = por %p212, %p213
      %p215 = scmp.ne.s32.totalorder %s203, %s204
      %p216 = scmp.eq.s32.totalorder %s26, 1
      %p217 = por %p215, %p216
      %p219 = scmp.ne.s32.totalorder %s204, %s218
      %p220 = scmp.eq.s32.totalorder %s26, 0
      %p221 = por %p219, %p220
      %s223 = sadd.s32 %s222, 1
      %p226 = scmp.eq.s32.totalorder %s20, 1
      %p227 = scmp.ne.s32.totalorder %s222, %s224
      %p228 = scmp.eq.s32.totalorder %s20, 0
      %p229 = por %p227, %p228
      %p230 = scmp.ne.s32.totalorder %s222, %s224
      %p231 = scmp.eq.s32.totalorder %s25, 1
      %p232 = por %p230, %p231
      %p233 = scmp.ne.s32.totalorder %s224, %s225
      %p234 = scmp.eq.s32.totalorder %s25, 0
      %p235 = por %p233, %p234
      %p236 = scmp.ne.s32.totalorder %s224, %s225
      %p237 = scmp.eq.s32.totalorder %s26, 1
      %p238 = por %p236, %p237
      %p240 = scmp.ne.s32.totalorder %s225, %s239
      %p241 = scmp.eq.s32.totalorder %s26, 0
      %p242 = por %p240, %p241
      %s244 = sadd.s32 %s243, 1
      %p247 = scmp.eq.s32.totalorder %s20, 1
      %p248 = scmp.ne.s32.totalorder %s243, %s245
      %p249 = scmp.eq.s32.totalorder %s20, 0
      %p250 = por %p248, %p249
      %p251 = scmp.ne.s32.totalorder %s243, %s245
      %p252 = scmp.eq.s32.totalorder %s25, 1
      %p253 = por %p251, %p252
      %p254 = scmp.ne.s32.totalorder %s245, %s246
      %p255 = scmp.eq.s32.totalorder %s25, 0
      %p256 = por %p254, %p255
      %p257 = scmp.ne.s32.totalorder %s245, %s246
      %p258 = scmp.eq.s32.totalorder %s26, 1
      %p259 = por %p257, %p258
      %p261 = scmp.ne.s32.totalorder %s246, %s260
      %p262 = scmp.eq.s32.totalorder %s26, 0
      %p263 = por %p261, %p262
      %s264 = ssub.s32 %s20, %s27
      %p265 = scmp.eq.s32.totalorder %s264, 0
      %s267 = sadd.s32 %s266, 1
      %s268 = scalar_select %p265, %s266, %s267
      %p271 = pneg %p265
      %p272 = scmp.eq.s32.totalorder %s20, 1
      %p273 = por %p271, %p272
      %p274 = scmp.ne.s32.totalorder %s266, %s269
      %p275 = scmp.eq.s32.totalorder %s20, 0
      %p276 = por %p274, %p275
      %p277 = scmp.ne.s32.totalorder %s266, %s269
      %p278 = scmp.eq.s32.totalorder %s25, 1
      %p279 = por %p277, %p278
      %p280 = scmp.ne.s32.totalorder %s269, %s270
      %p281 = scmp.eq.s32.totalorder %s25, 0
      %p282 = por %p280, %p281
      %p283 = scmp.ne.s32.totalorder %s269, %s270
      %p284 = scmp.eq.s32.totalorder %s26, 1
      %p285 = por %p283, %p284
      %p287 = scmp.ne.s32.totalorder %s270, %s286
      %p288 = scmp.eq.s32.totalorder %s26, 0
      %p289 = por %p287, %p288
      %p290 = scmp.le.s32.totalorder 1, %s20
      %p291 = scmp.lt.s32.totalorder %s20, 3
      %p292 = pnand %p290, %p291
      %p293 = pneg %p292
      // Predicated region
      $region9: #{tpu_custom_call.1} parent=5 // pred_check
        _
      $region10: #{tpu_custom_call.1} parent=5 // pred_check_branch
        %295 = sbr.rel (%p292) target = $region12
      $region11: #{tpu_custom_call.1} parent=5 // pred_region
        %s296 = ssub.s32 %s20, 1
        // Predicated region
        $region13: #{tpu_custom_call.1} parent=11 // pred_check
          %p297 = pneg %p67
        $region14: #{tpu_custom_call.1} parent=11 // pred_check_branch
          %299 = sbr.rel (%p297) target = $region16
        $region15: #{tpu_custom_call.1} parent=11 // pred_region
          _
        $region16: #{tpu_custom_call.1} parent=11 // pred_fallthru
          _
        // Predicated region
        $region17: #{tpu_custom_call.1} parent=11 // pred_check
          %p300 = pneg %p88
        $region18: #{tpu_custom_call.1} parent=11 // pred_check_branch
          %302 = sbr.rel (%p300) target = $region20
        $region19: #{tpu_custom_call.1} parent=11 // pred_region
          _
        $region20: #{tpu_custom_call.1} parent=11 // pred_fallthru
          _
        // Predicated region
        $region21: #{tpu_custom_call.1} parent=11 // pred_check
          %p303 = pneg %p109
        $region22: #{tpu_custom_call.1} parent=11 // pred_check_branch
          %305 = sbr.rel (%p303) target = $region24
        $region23: #{tpu_custom_call.1} parent=11 // pred_region
          _
        $region24: #{tpu_custom_call.1} parent=11 // pred_fallthru
          _
        // Predicated region
        $region25: #{tpu_custom_call.1} parent=11 // pred_check
          %p306 = pneg %p130
        $region26: #{tpu_custom_call.1} parent=11 // pred_check_branch
          %308 = sbr.rel (%p306) target = $region28
        $region27: #{tpu_custom_call.1} parent=11 // pred_region
          _
        $region28: #{tpu_custom_call.1} parent=11 // pred_fallthru
          _
        // Predicated region
        $region29: #{tpu_custom_call.1} parent=11 // pred_check
          %p309 = pneg %p151
        $region30: #{tpu_custom_call.1} parent=11 // pred_check_branch
          %311 = sbr.rel (%p309) target = $region32
        $region31: #{tpu_custom_call.1} parent=11 // pred_region
          _
        $region32: #{tpu_custom_call.1} parent=11 // pred_fallthru
          _
        // Predicated region
        $region33: #{tpu_custom_call.1} parent=11 // pred_check
          %p312 = pneg %p172
        $region34: #{tpu_custom_call.1} parent=11 // pred_check_branch
          %314 = sbr.rel (%p312) target = $region36
        $region35: #{tpu_custom_call.1} parent=11 // pred_region
          _
        $region36: #{tpu_custom_call.1} parent=11 // pred_fallthru
          _
        // Predicated region
        $region37: #{tpu_custom_call.1} parent=11 // pred_check
          %p315 = pneg %p193
        $region38: #{tpu_custom_call.1} parent=11 // pred_check_branch
          %317 = sbr.rel (%p315) target = $region40
        $region39: #{tpu_custom_call.1} parent=11 // pred_region
          _
        $region40: #{tpu_custom_call.1} parent=11 // pred_fallthru
          _
        // Predicated region
        $region41: #{tpu_custom_call.1} parent=11 // pred_check
          %p318 = pneg %p214
        $region42: #{tpu_custom_call.1} parent=11 // pred_check_branch
          %320 = sbr.rel (%p318) target = $region44
        $region43: #{tpu_custom_call.1} parent=11 // pred_region
          _
        $region44: #{tpu_custom_call.1} parent=11 // pred_fallthru
          _
        // Predicated region
        $region45: #{tpu_custom_call.1} parent=11 // pred_check
          %p321 = pneg %p235
        $region46: #{tpu_custom_call.1} parent=11 // pred_check_branch
          %323 = sbr.rel (%p321) target = $region48
        $region47: #{tpu_custom_call.1} parent=11 // pred_region
          _
        $region48: #{tpu_custom_call.1} parent=11 // pred_fallthru
          _
        // Predicated region
        $region49: #{tpu_custom_call.1} parent=11 // pred_check
          %p324 = pneg %p256
        $region50: #{tpu_custom_call.1} parent=11 // pred_check_branch
          %326 = sbr.rel (%p324) target = $region52
        $region51: #{tpu_custom_call.1} parent=11 // pred_region
          _
        $region52: #{tpu_custom_call.1} parent=11 // pred_fallthru
          _
      $region12: #{tpu_custom_call.1} parent=5 // pred_fallthru
        _
      %p327 = scmp.lt.s32.totalorder %s20, 2
      // Predicated region
      $region53: #{tpu_custom_call.1} parent=5 // pred_check
        %p328 = pneg %p327
      $region54: #{tpu_custom_call.1} parent=5 // pred_check_branch
        %330 = sbr.rel (%p328) target = $region56
      $region55: #{tpu_custom_call.1} parent=5 // pred_region
        // Predicated region
        $region57: #{tpu_custom_call.1} parent=55 // pred_check
          %p331 = pneg %p40
        $region58: #{tpu_custom_call.1} parent=55 // pred_check_branch
          %333 = sbr.rel (%p331) target = $region60
        $region59: #{tpu_custom_call.1} parent=55 // pred_region
          %p334 = scmp.lt.s32.totalorder %s20, 1
          %s335 = scalar_select %p334, %s20, 1
          %s336 = smul.addr %s335, 8
          %s337 = scalar_lea.vmem %s0, %s336
        $region60: #{tpu_custom_call.1} parent=55 // pred_fallthru
          _
      $region56: #{tpu_custom_call.1} parent=5 // pred_fallthru
        _
      %p338 = scmp.le.s32.totalorder 1, %s20
      %p339 = scmp.lt.s32.totalorder %s20, 3
      %p340 = pnand %p338, %p339
      %p341 = pneg %p340
      // Predicated region
      $region61: #{tpu_custom_call.1} parent=5 // pred_check
        _
      $region62: #{tpu_custom_call.1} parent=5 // pred_check_branch
        %343 = sbr.rel (%p340) target = $region64
      $region63: #{tpu_custom_call.1} parent=5 // pred_region
        %s344 = ssub.s32 %s20, 1
        %p345 = scmp.lt.s32.totalorder %s25, 1
        %s346 = scalar_select %p345, %s25, 1
        %s347 = smul.addr %s346, 8
        %s348 = scalar_lea.vmem %s0, %s347
        %p349 = pneg %p46
        %p350 = pneg %p43
        %p351 = pneg %p67
        %p352 = pneg %p64
        %p353 = pneg %p88
        %p354 = pneg %p85
        %p355 = pneg %p109
        %p356 = pneg %p106
        %p357 = pneg %p130
        %p358 = pneg %p127
        %p359 = pneg %p151
        %p360 = pneg %p148
        %p361 = pneg %p172
        %p362 = pneg %p169
        %p363 = pneg %p193
        %p364 = pneg %p190
        %p365 = pneg %p214
        %p366 = pneg %p211
        %p367 = pneg %p235
        %p368 = pneg %p232
        %p369 = pneg %p256
        %p370 = pneg %p253
        %p371 = pneg %p282
        %p372 = pneg %p279
        %s373 = sand.u32 %s269, 1
        %s374 = scalar_lea.sflag [#allocation3], %s373
        %s375 = sand.u32 %s269, 1
        %s376 = smul.addr %s375, 8
        %s377 = scalar_lea.vmem [#allocation2], %s376
        %p378 = scmp.lt.s32.totalorder %s25, 1
        %s379 = scalar_select %p378, %s25, 1
        %s380 = smul.addr %s379, 8
        %s381 = scalar_lea.vmem %s0, %s380
        %v383 = vld [vmem:[%s381] sm:$0xff]
        %vm384 = vcmask 261120
        %v385 = vsel %vm384, %v383, 0.0
        %386 = vadd.xlane.f32.xlu0 %v385
        %v387 = vpop.xlane.xlu0 %386
        %v388 = vrcp.pop 32.0
        %v389 = vmul.f32 %v387, %v388
        %v390 = vsub.f32 %v383, %v389
        %v391 = vmul.f32 %v390, %v390
        %v392 = vsel %vm384, %v391, 0.0
        %393 = vadd.xlane.f32.xlu0 %v392
        %v394 = vpop.xlane.xlu0 %393
        %v395 = vmul.f32 %v394, %v388
        %v396 = vadd.f32 %v395, 1e-05
        %v397 = vrsqrt.pop %v396
        %v398 = vmul.f32 %v390, %v397
        %v399 = vld [vmem:[%s1] sm:$0x1]
        %v401 = vlaneseq
        %v402 = vshrl.u32 %v401, 7
        %v403 = vsub.s32 0, %v402
        %v404 = vrot.slane %v399, %v403
        %v406 = vmul.f32 %v398, %v404
        %v407 = vld [vmem:[%s2] sm:$0x1]
        %v409 = vlaneseq
        %v410 = vshrl.u32 %v409, 7
        %v411 = vsub.s32 0, %v410
        %v412 = vrot.slane %v407, %v411
        %v414 = vadd.f32 %v406, %v412
        %v415 = vpack.c.bf16 %v414, %v414
        %v416 = vld [vmem:[%s3] sm:$0xf]
        %v417 = vld [vmem:[%s3 + $0x4] sm:$0xf]
        %v418 = vld [vmem:[%s3 + $0x8] sm:$0xf]
        %v419 = vld [vmem:[%s3 + $0xc] sm:$0xf]
        %v420 = vld [vmem:[%s3 + $0x10] sm:$0xf]
        %v421 = vld [vmem:[%s3 + $0x14] sm:$0xf]
        %v422 = vld [vmem:[%s3 + $0x18] sm:$0xf]
        %v423 = vld [vmem:[%s3 + $0x1c] sm:$0xf]
        %v424 = vld [vmem:[%s3 + $0x20] sm:$0xf]
        %v425 = vld [vmem:[%s3 + $0x24] sm:$0xf]
        %v426 = vld [vmem:[%s3 + $0x28] sm:$0xf]
        %v427 = vld [vmem:[%s3 + $0x2c] sm:$0xf]
        %v428 = vld [vmem:[%s3 + $0x30] sm:$0xf]
        %v429 = vld [vmem:[%s3 + $0x34] sm:$0xf]
        %v430 = vld [vmem:[%s3 + $0x38] sm:$0xf]
        %v431 = vld [vmem:[%s3 + $0x3c] sm:$0xf]
        %v432 = vld [vmem:[%s4] sm:$0xf]
        %v433 = vld [vmem:[%s4 + $0x4] sm:$0xf]
        %v434 = vld [vmem:[%s4 + $0x8] sm:$0xf]
        %v435 = vld [vmem:[%s4 + $0xc] sm:$0xf]
        %v436 = vld [vmem:[%s4 + $0x10] sm:$0xf]
        %v437 = vld [vmem:[%s4 + $0x14] sm:$0xf]
        %v438 = vld [vmem:[%s4 + $0x18] sm:$0xf]
        %v439 = vld [vmem:[%s4 + $0x1c] sm:$0xf]
        %v440 = vld [vmem:[%s4 + $0x20] sm:$0xf]
        %v441 = vld [vmem:[%s4 + $0x24] sm:$0xf]
        %v442 = vld [vmem:[%s4 + $0x28] sm:$0xf]
        %v443 = vld [vmem:[%s4 + $0x2c] sm:$0xf]
        %v444 = vld [vmem:[%s4 + $0x30] sm:$0xf]
        %v445 = vld [vmem:[%s4 + $0x34] sm:$0xf]
        %v446 = vld [vmem:[%s4 + $0x38] sm:$0xf]
        %v447 = vld [vmem:[%s4 + $0x3c] sm:$0xf]
        %v448 = vld [vmem:[%s5] sm:$0xf]
        %v449 = vld [vmem:[%s5 + $0x4] sm:$0xf]
        %v450 = vld [vmem:[%s5 + $0x8] sm:$0xf]
        %v451 = vld [vmem:[%s5 + $0xc] sm:$0xf]
        %v452 = vld [vmem:[%s5 + $0x10] sm:$0xf]
        %v453 = vld [vmem:[%s5 + $0x14] sm:$0xf]
        %v454 = vld [vmem:[%s5 + $0x18] sm:$0xf]
        %v455 = vld [vmem:[%s5 + $0x1c] sm:$0xf]
        %v456 = vld [vmem:[%s5 + $0x20] sm:$0xf]
        %v457 = vld [vmem:[%s5 + $0x24] sm:$0xf]
        %v458 = vld [vmem:[%s5 + $0x28] sm:$0xf]
        %v459 = vld [vmem:[%s5 + $0x2c] sm:$0xf]
        %v460 = vld [vmem:[%s5 + $0x30] sm:$0xf]
        %v461 = vld [vmem:[%s5 + $0x34] sm:$0xf]
        %v462 = vld [vmem:[%s5 + $0x38] sm:$0xf]
        %v463 = vld [vmem:[%s5 + $0x3c] sm:$0xf]
        %v464 = vld [vmem:[%s6] sm:$0x1]
        %v465 = vld [vmem:[%s6 + $0x1] sm:$0x1]
        %v466 = vld [vmem:[%s6 + $0x2] sm:$0x1]
        %v467 = vld [vmem:[%s6 + $0x3] sm:$0x1]
        %v472 = vlaneseq
        %v473 = vshrl.u32 %v472, 7
        %v474 = vsub.s32 0, %v473
        %v475 = vrot.slane %v464, %v474
        %v476 = vlaneseq
        %v477 = vshrl.u32 %v476, 7
        %v478 = vsub.s32 0, %v477
        %v479 = vrot.slane %v465, %v478
        %v480 = vlaneseq
        %v481 = vshrl.u32 %v480, 7
        %v482 = vsub.s32 0, %v481
        %v483 = vrot.slane %v466, %v482
        %v484 = vlaneseq
        %v485 = vshrl.u32 %v484, 7
        %v486 = vsub.s32 0, %v485
        %v487 = vrot.slane %v467, %v486
        %v496 = vunpack.c.l.b16 %v416
        %v497 = vunpack.c.l.b16 %v417
        %v498 = vunpack.c.l.b16 %v418
        %v499 = vunpack.c.l.b16 %v419
        %v500 = vpack.c.b16 %v497, %v496
        %v501 = vpack.c.b16 %v499, %v498
        %v505 = vsel %vm384, %v415, 0
        %507 = vmatprep.subr.bf16.mxu0 0
        %508 = vmatpush1.bf16.msra.mxu0 %v500
        %509 = vmatprep.subr.bf16.mxu0 0
        %510 = vmatpush1.bf16.msra.mxu0 %v501
        %511 = vmatprep.subr.bf16.mxu0 0
        %512 = vmatpush1.bf16.msra.mxu0 0
        %513 = vmatprep.subr.bf16.mxu0 0
        %514 = vmatpush1.bf16.msra.mxu0 0
        %515 = vmatprep.subr.bf16.mxu0 0
        %516 = vmatpush1.bf16.msra.mxu0 0
        %517 = vmatprep.subr.bf16.mxu0 0
        %518 = vmatpush1.bf16.msra.mxu0 0
        %519 = vmatprep.subr.bf16.mxu0 0
        %520 = vmatpush1.bf16.msra.mxu0 0
        %521 = vmatprep.subr.bf16.mxu0 0
        %522 = vmatpush1.bf16.msra.mxu0 0
        %523 = vmatprep.subr.bf16.mxu0 0
        %524 = vmatpush1.bf16.msra.mxu0 0
        %525 = vmatprep.subr.bf16.mxu0 0
        %526 = vmatpush1.bf16.msra.mxu0 0
        %527 = vmatprep.subr.bf16.mxu0 0
        %528 = vmatpush1.bf16.msra.mxu0 0
        %529 = vmatprep.subr.bf16.mxu0 0
        %530 = vmatpush1.bf16.msra.mxu0 0
        %531 = vmatprep.subr.bf16.mxu0 0
        %532 = vmatpush1.bf16.msra.mxu0 0
        %533 = vmatprep.subr.bf16.mxu0 0
        %534 = vmatpush1.bf16.msra.mxu0 0
        %535 = vmatprep.subr.bf16.mxu0 0
        %536 = vmatpush1.bf16.msra.mxu0 0
        %537 = vmatprep.subr.bf16.mxu0 0
        %538 = vmatpush1.bf16.msra.mxu0 0
        %539 = vmatprep.mubr.bf16.mxu0 0
        %540 = vmatmul.mubr.bf16.gmra.mrb[0].mxu0 %v505
        %v541 = vpop.f32.mrb[0].mxu0
        %v542 = vadd.f32 %v475, %v541
        %v543 = vpop.f32.mrb[0].mxu0
        %v544 = vpop.f32.mrb[0].mxu0
        %v545 = vpop.f32.mrb[0].mxu0
        %546 = vdwg.mxu0
        %v551 = vunpack.c.l.b16 %v420
        %v552 = vunpack.c.l.b16 %v421
        %v553 = vunpack.c.l.b16 %v422
        %v554 = vunpack.c.l.b16 %v423
        %v555 = vpack.c.b16 %v552, %v551
        %v556 = vpack.c.b16 %v554, %v553
        %559 = vmatprep.subr.bf16.mxu0 0
        %560 = vmatpush1.bf16.msra.mxu0 %v555
        %561 = vmatprep.subr.bf16.mxu0 0
        %562 = vmatpush1.bf16.msra.mxu0 %v556
        %563 = vmatprep.subr.bf16.mxu0 0
        %564 = vmatpush1.bf16.msra.mxu0 0
        %565 = vmatprep.subr.bf16.mxu0 0
        %566 = vmatpush1.bf16.msra.mxu0 0
        %567 = vmatprep.subr.bf16.mxu0 0
        %568 = vmatpush1.bf16.msra.mxu0 0
        %569 = vmatprep.subr.bf16.mxu0 0
        %570 = vmatpush1.bf16.msra.mxu0 0
        %571 = vmatprep.subr.bf16.mxu0 0
        %572 = vmatpush1.bf16.msra.mxu0 0
        %573 = vmatprep.subr.bf16.mxu0 0
        %574 = vmatpush1.bf16.msra.mxu0 0
        %575 = vmatprep.subr.bf16.mxu0 0
        %576 = vmatpush1.bf16.msra.mxu0 0
        %577 = vmatprep.subr.bf16.mxu0 0
        %578 = vmatpush1.bf16.msra.mxu0 0
        %579 = vmatprep.subr.bf16.mxu0 0
        %580 = vmatpush1.bf16.msra.mxu0 0
        %581 = vmatprep.subr.bf16.mxu0 0
        %582 = vmatpush1.bf16.msra.mxu0 0
        %583 = vmatprep.subr.bf16.mxu0 0
        %584 = vmatpush1.bf16.msra.mxu0 0
        %585 = vmatprep.subr.bf16.mxu0 0
        %586 = vmatpush1.bf16.msra.mxu0 0
        %587 = vmatprep.subr.bf16.mxu0 0
        %588 = vmatpush1.bf16.msra.mxu0 0
        %589 = vmatprep.subr.bf16.mxu0 0
        %590 = vmatpush1.bf16.msra.mxu0 0
        %591 = vmatprep.mubr.bf16.mxu0 0
        %592 = vmatmul.mubr.bf16.gmra.mrb[0].mxu0 %v505
        %v593 = vpop.f32.mrb[0].mxu0
        %v594 = vadd.f32 %v479, %v593
        %v595 = vpop.f32.mrb[0].mxu0
        %v596 = vpop.f32.mrb[0].mxu0
        %v597 = vpop.f32.mrb[0].mxu0
        %598 = vdwg.mxu0
        %v603 = vunpack.c.l.b16 %v424
        %v604 = vunpack.c.l.b16 %v425
        %v605 = vunpack.c.l.b16 %v426
        %v606 = vunpack.c.l.b16 %v427
        %v607 = vpack.c.b16 %v604, %v603
        %v608 = vpack.c.b16 %v606, %v605
        %611 = vmatprep.subr.bf16.mxu0 0
        %612 = vmatpush1.bf16.msra.mxu0 %v607
        %613 = vmatprep.subr.bf16.mxu0 0
        %614 = vmatpush1.bf16.msra.mxu0 %v608
        %615 = vmatprep.subr.bf16.mxu0 0
        %616 = vmatpush1.bf16.msra.mxu0 0
        %617 = vmatprep.subr.bf16.mxu0 0
        %618 = vmatpush1.bf16.msra.mxu0 0
        %619 = vmatprep.subr.bf16.mxu0 0
        %620 = vmatpush1.bf16.msra.mxu0 0
        %621 = vmatprep.subr.bf16.mxu0 0
        %622 = vmatpush1.bf16.msra.mxu0 0
        %623 = vmatprep.subr.bf16.mxu0 0
        %624 = vmatpush1.bf16.msra.mxu0 0
        %625 = vmatprep.subr.bf16.mxu0 0
        %626 = vmatpush1.bf16.msra.mxu0 0
        %627 = vmatprep.subr.bf16.mxu0 0
        %628 = vmatpush1.bf16.msra.mxu0 0
        %629 = vmatprep.subr.bf16.mxu0 0
        %630 = vmatpush1.bf16.msra.mxu0 0
        %631 = vmatprep.subr.bf16.mxu0 0
        %632 = vmatpush1.bf16.msra.mxu0 0
        %633 = vmatprep.subr.bf16.mxu0 0
        %634 = vmatpush1.bf16.msra.mxu0 0
        %635 = vmatprep.subr.bf16.mxu0 0
        %636 = vmatpush1.bf16.msra.mxu0 0
        %637 = vmatprep.subr.bf16.mxu0 0
        %638 = vmatpush1.bf16.msra.mxu0 0
        %639 = vmatprep.subr.bf16.mxu0 0
        %640 = vmatpush1.bf16.msra.mxu0 0
        %641 = vmatprep.subr.bf16.mxu0 0
        %642 = vmatpush1.bf16.msra.mxu0 0
        %643 = vmatprep.mubr.bf16.mxu0 0
        %644 = vmatmul.mubr.bf16.gmra.mrb[0].mxu0 %v505
        %v645 = vpop.f32.mrb[0].mxu0
        %v646 = vadd.f32 %v483, %v645
        %v647 = vpop.f32.mrb[0].mxu0
        %v648 = vpop.f32.mrb[0].mxu0
        %v649 = vpop.f32.mrb[0].mxu0
        %650 = vdwg.mxu0
        %v655 = vunpack.c.l.b16 %v428
        %v656 = vunpack.c.l.b16 %v429
        %v657 = vunpack.c.l.b16 %v430
        %v658 = vunpack.c.l.b16 %v431
        %v659 = vpack.c.b16 %v656, %v655
        %v660 = vpack.c.b16 %v658, %v657
        %663 = vmatprep.subr.bf16.mxu0 0
        %664 = vmatpush1.bf16.msra.mxu0 %v659
        %665 = vmatprep.subr.bf16.mxu0 0
        %666 = vmatpush1.bf16.msra.mxu0 %v660
        %667 = vmatprep.subr.bf16.mxu0 0
        %668 = vmatpush1.bf16.msra.mxu0 0
        %669 = vmatprep.subr.bf16.mxu0 0
        %670 = vmatpush1.bf16.msra.mxu0 0
        %671 = vmatprep.subr.bf16.mxu0 0
        %672 = vmatpush1.bf16.msra.mxu0 0
        %673 = vmatprep.subr.bf16.mxu0 0
        %674 = vmatpush1.bf16.msra.mxu0 0
        %675 = vmatprep.subr.bf16.mxu0 0
        %676 = vmatpush1.bf16.msra.mxu0 0
        %677 = vmatprep.subr.bf16.mxu0 0
        %678 = vmatpush1.bf16.msra.mxu0 0
        %679 = vmatprep.subr.bf16.mxu0 0
        %680 = vmatpush1.bf16.msra.mxu0 0
        %681 = vmatprep.subr.bf16.mxu0 0
        %682 = vmatpush1.bf16.msra.mxu0 0
        %683 = vmatprep.subr.bf16.mxu0 0
        %684 = vmatpush1.bf16.msra.mxu0 0
        %685 = vmatprep.subr.bf16.mxu0 0
        %686 = vmatpush1.bf16.msra.mxu0 0
        %687 = vmatprep.subr.bf16.mxu0 0
        %688 = vmatpush1.bf16.msra.mxu0 0
        %689 = vmatprep.subr.bf16.mxu0 0
        %690 = vmatpush1.bf16.msra.mxu0 0
        %691 = vmatprep.subr.bf16.mxu0 0
        %692 = vmatpush1.bf16.msra.mxu0 0
        %693 = vmatprep.subr.bf16.mxu0 0
        %694 = vmatpush1.bf16.msra.mxu0 0
        %695 = vmatprep.mubr.bf16.mxu0 0
        %696 = vmatmul.mubr.bf16.gmra.mrb[0].mxu0 %v505
        %v697 = vpop.f32.mrb[0].mxu0
        %v698 = vadd.f32 %v487, %v697
        %v699 = vpop.f32.mrb[0].mxu0
        %v700 = vpop.f32.mrb[0].mxu0
        %v701 = vpop.f32.mrb[0].mxu0
        %702 = vdwg.mxu0
        %v703 = vmul.f32 %v542, 0.35355338
        %v704 = vmul.f32 %v594, 0.35355338
        %v705 = vmul.f32 %v646, 0.35355338
        %v706 = vmul.f32 %v698, 0.35355338
        %v707 = vld [vmem:[%s7] sm:$0x1]
        %v708 = vld [vmem:[%s7 + $0x1] sm:$0x1]
        %v709 = vld [vmem:[%s7 + $0x2] sm:$0x1]
        %v710 = vld [vmem:[%s7 + $0x3] sm:$0x1]
        %v715 = vlaneseq
        %v716 = vshrl.u32 %v715, 7
        %v717 = vsub.s32 0, %v716
        %v718 = vrot.slane %v707, %v717
        %v719 = vlaneseq
        %v720 = vshrl.u32 %v719, 7
        %v721 = vsub.s32 0, %v720
        %v722 = vrot.slane %v708, %v721
        %v723 = vlaneseq
        %v724 = vshrl.u32 %v723, 7
        %v725 = vsub.s32 0, %v724
        %v726 = vrot.slane %v709, %v725
        %v727 = vlaneseq
        %v728 = vshrl.u32 %v727, 7
        %v729 = vsub.s32 0, %v728
        %v730 = vrot.slane %v710, %v729
        %v739 = vunpack.c.l.b16 %v432
        %v740 = vunpack.c.l.b16 %v433
        %v741 = vunpack.c.l.b16 %v434
        %v742 = vunpack.c.l.b16 %v435
        %v743 = vpack.c.b16 %v740, %v739
        %v744 = vpack.c.b16 %v742, %v741
        %747 = vmatprep.subr.bf16.mxu0 0
        %748 = vmatpush1.bf16.msra.mxu0 %v743
        %749 = vmatprep.subr.bf16.mxu0 0
        %750 = vmatpush1.bf16.msra.mxu0 %v744
        %751 = vmatprep.subr.bf16.mxu0 0
        %752 = vmatpush1.bf16.msra.mxu0 0
        %753 = vmatprep.subr.bf16.mxu0 0
        %754 = vmatpush1.bf16.msra.mxu0 0
        %755 = vmatprep.subr.bf16.mxu0 0
        %756 = vmatpush1.bf16.msra.mxu0 0
        %757 = vmatprep.subr.bf16.mxu0 0
        %758 = vmatpush1.bf16.msra.mxu0 0
        %759 = vmatprep.subr.bf16.mxu0 0
        %760 = vmatpush1.bf16.msra.mxu0 0
        %761 = vmatprep.subr.bf16.mxu0 0
        %762 = vmatpush1.bf16.msra.mxu0 0
        %763 = vmatprep.subr.bf16.mxu0 0
        %764 = vmatpush1.bf16.msra.mxu0 0
        %765 = vmatprep.subr.bf16.mxu0 0
        %766 = vmatpush1.bf16.msra.mxu0 0
        %767 = vmatprep.subr.bf16.mxu0 0
        %768 = vmatpush1.bf16.msra.mxu0 0
        %769 = vmatprep.subr.bf16.mxu0 0
        %770 = vmatpush1.bf16.msra.mxu0 0
        %771 = vmatprep.subr.bf16.mxu0 0
        %772 = vmatpush1.bf16.msra.mxu0 0
        %773 = vmatprep.subr.bf16.mxu0 0
        %774 = vmatpush1.bf16.msra.mxu0 0
        %775 = vmatprep.subr.bf16.mxu0 0
        %776 = vmatpush1.bf16.msra.mxu0 0
        %777 = vmatprep.subr.bf16.mxu0 0
        %778 = vmatpush1.bf16.msra.mxu0 0
        %779 = vmatprep.mubr.bf16.mxu0 0
        %780 = vmatmul.mubr.bf16.gmra.mrb[0].mxu0 %v505
        %v781 = vpop.f32.mrb[0].mxu0
        %v782 = vadd.f32 %v718, %v781
        %v783 = vpop.f32.mrb[0].mxu0
        %v784 = vpop.f32.mrb[0].mxu0
        %v785 = vpop.f32.mrb[0].mxu0
        %786 = vdwg.mxu0
        %v791 = vunpack.c.l.b16 %v436
        %v792 = vunpack.c.l.b16 %v437
        %v793 = vunpack.c.l.b16 %v438
        %v794 = vunpack.c.l.b16 %v439
        %v795 = vpack.c.b16 %v792, %v791
        %v796 = vpack.c.b16 %v794, %v793
        %799 = vmatprep.subr.bf16.mxu0 0
        %800 = vmatpush1.bf16.msra.mxu0 %v795
        %801 = vmatprep.subr.bf16.mxu0 0
        %802 = vmatpush1.bf16.msra.mxu0 %v796
        %803 = vmatprep.subr.bf16.mxu0 0
        %804 = vmatpush1.bf16.msra.mxu0 0
        %805 = vmatprep.subr.bf16.mxu0 0
        %806 = vmatpush1.bf16.msra.mxu0 0
        %807 = vmatprep.subr.bf16.mxu0 0
        %808 = vmatpush1.bf16.msra.mxu0 0
        %809 = vmatprep.subr.bf16.mxu0 0
        %810 = vmatpush1.bf16.msra.mxu0 0
        %811 = vmatprep.subr.bf16.mxu0 0
        %812 = vmatpush1.bf16.msra.mxu0 0
        %813 = vmatprep.subr.bf16.mxu0 0
        %814 = vmatpush1.bf16.msra.mxu0 0
        %815 = vmatprep.subr.bf16.mxu0 0
        %816 = vmatpush1.bf16.msra.mxu0 0
        %817 = vmatprep.subr.bf16.mxu0 0
        %818 = vmatpush1.bf16.msra.mxu0 0
        %819 = vmatprep.subr.bf16.mxu0 0
        %820 = vmatpush1.bf16.msra.mxu0 0
        %821 = vmatprep.subr.bf16.mxu0 0
        %822 = vmatpush1.bf16.msra.mxu0 0
        %823 = vmatprep.subr.bf16.mxu0 0
        %824 = vmatpush1.bf16.msra.mxu0 0
        %825 = vmatprep.subr.bf16.mxu0 0
        %826 = vmatpush1.bf16.msra.mxu0 0
        %827 = vmatprep.subr.bf16.mxu0 0
        %828 = vmatpush1.bf16.msra.mxu0 0
        %829 = vmatprep.subr.bf16.mxu0 0
        %830 = vmatpush1.bf16.msra.mxu0 0
        %831 = vmatprep.mubr.bf16.mxu0 0
        %832 = vmatmul.mubr.bf16.gmra.mrb[0].mxu0 %v505
        %v833 = vpop.f32.mrb[0].mxu0
        %v834 = vadd.f32 %v722, %v833
        %v835 = vpop.f32.mrb[0].mxu0
        %v836 = vpop.f32.mrb[0].mxu0
        %v837 = vpop.f32.mrb[0].mxu0
        %838 = vdwg.mxu0
        %v843 = vunpack.c.l.b16 %v440
        %v844 = vunpack.c.l.b16 %v441
        %v845 = vunpack.c.l.b16 %v442
        %v846 = vunpack.c.l.b16 %v443
        %v847 = vpack.c.b16 %v844, %v843
        %v848 = vpack.c.b16 %v846, %v845
        %851 = vmatprep.subr.bf16.mxu0 0
        %852 = vmatpush1.bf16.msra.mxu0 %v847
        %853 = vmatprep.subr.bf16.mxu0 0
        %854 = vmatpush1.bf16.msra.mxu0 %v848
        %855 = vmatprep.subr.bf16.mxu0 0
        %856 = vmatpush1.bf16.msra.mxu0 0
        %857 = vmatprep.subr.bf16.mxu0 0
        %858 = vmatpush1.bf16.msra.mxu0 0
        %859 = vmatprep.subr.bf16.mxu0 0
        %860 = vmatpush1.bf16.msra.mxu0 0
        %861 = vmatprep.subr.bf16.mxu0 0
        %862 = vmatpush1.bf16.msra.mxu0 0
        %863 = vmatprep.subr.bf16.mxu0 0
        %864 = vmatpush1.bf16.msra.mxu0 0
        %865 = vmatprep.subr.bf16.mxu0 0
        %866 = vmatpush1.bf16.msra.mxu0 0
        %867 = vmatprep.subr.bf16.mxu0 0
        %868 = vmatpush1.bf16.msra.mxu0 0
        %869 = vmatprep.subr.bf16.mxu0 0
        %870 = vmatpush1.bf16.msra.mxu0 0
        %871 = vmatprep.subr.bf16.mxu0 0
        %872 = vmatpush1.bf16.msra.mxu0 0
        %873 = vmatprep.subr.bf16.mxu0 0
        %874 = vmatpush1.bf16.msra.mxu0 0
        %875 = vmatprep.subr.bf16.mxu0 0
        %876 = vmatpush1.bf16.msra.mxu0 0
        %877 = vmatprep.subr.bf16.mxu0 0
        %878 = vmatpush1.bf16.msra.mxu0 0
        %879 = vmatprep.subr.bf16.mxu0 0
        %880 = vmatpush1.bf16.msra.mxu0 0
        %881 = vmatprep.subr.bf16.mxu0 0
        %882 = vmatpush1.bf16.msra.mxu0 0
        %883 = vmatprep.mubr.bf16.mxu0 0
        %884 = vmatmul.mubr.bf16.gmra.mrb[0].mxu0 %v505
        %v885 = vpop.f32.mrb[0].mxu0
        %v886 = vadd.f32 %v726, %v885
        %v887 = vpop.f32.mrb[0].mxu0
        %v888 = vpop.f32.mrb[0].mxu0
        %v889 = vpop.f32.mrb[0].mxu0
        %890 = vdwg.mxu0
        %v895 = vunpack.c.l.b16 %v444
        %v896 = vunpack.c.l.b16 %v445
        %v897 = vunpack.c.l.b16 %v446
        %v898 = vunpack.c.l.b16 %v447
        %v899 = vpack.c.b16 %v896, %v895
        %v900 = vpack.c.b16 %v898, %v897
        %903 = vmatprep.subr.bf16.mxu0 0
        %904 = vmatpush1.bf16.msra.mxu0 %v899
        %905 = vmatprep.subr.bf16.mxu0 0
        %906 = vmatpush1.bf16.msra.mxu0 %v900
        %907 = vmatprep.subr.bf16.mxu0 0
        %908 = vmatpush1.bf16.msra.mxu0 0
        %909 = vmatprep.subr.bf16.mxu0 0
        %910 = vmatpush1.bf16.msra.mxu0 0
        %911 = vmatprep.subr.bf16.mxu0 0
        %912 = vmatpush1.bf16.msra.mxu0 0
        %913 = vmatprep.subr.bf16.mxu0 0
        %914 = vmatpush1.bf16.msra.mxu0 0
        %915 = vmatprep.subr.bf16.mxu0 0
        %916 = vmatpush1.bf16.msra.mxu0 0
        %917 = vmatprep.subr.bf16.mxu0 0
        %918 = vmatpush1.bf16.msra.mxu0 0
        %919 = vmatprep.subr.bf16.mxu0 0
        %920 = vmatpush1.bf16.msra.mxu0 0
        %921 = vmatprep.subr.bf16.mxu0 0
        %922 = vmatpush1.bf16.msra.mxu0 0
        %923 = vmatprep.subr.bf16.mxu0 0
        %924 = vmatpush1.bf16.msra.mxu0 0
        %925 = vmatprep.subr.bf16.mxu0 0
        %926 = vmatpush1.bf16.msra.mxu0 0
        %927 = vmatprep.subr.bf16.mxu0 0
        %928 = vmatpush1.bf16.msra.mxu0 0
        %929 = vmatprep.subr.bf16.mxu0 0
        %930 = vmatpush1.bf16.msra.mxu0 0
        %931 = vmatprep.subr.bf16.mxu0 0
        %932 = vmatpush1.bf16.msra.mxu0 0
        %933 = vmatprep.subr.bf16.mxu0 0
        %934 = vmatpush1.bf16.msra.mxu0 0
        %935 = vmatprep.mubr.bf16.mxu0 0
        %936 = vmatmul.mubr.bf16.gmra.mrb[0].mxu0 %v505
        %v937 = vpop.f32.mrb[0].mxu0
        %v938 = vadd.f32 %v730, %v937
        %v939 = vpop.f32.mrb[0].mxu0
        %v940 = vpop.f32.mrb[0].mxu0
        %v941 = vpop.f32.mrb[0].mxu0
        %942 = vdwg.mxu0
        %v943 = vld [vmem:[%s8] sm:$0x1]
        %v944 = vld [vmem:[%s8 + $0x1] sm:$0x1]
        %v945 = vld [vmem:[%s8 + $0x2] sm:$0x1]
        %v946 = vld [vmem:[%s8 + $0x3] sm:$0x1]
        %v951 = vlaneseq
        %v952 = vshrl.u32 %v951, 7
        %v953 = vsub.s32 0, %v952
        %v954 = vrot.slane %v943, %v953
        %v955 = vlaneseq
        %v956 = vshrl.u32 %v955, 7
        %v957 = vsub.s32 0, %v956
        %v958 = vrot.slane %v944, %v957
        %v959 = vlaneseq
        %v960 = vshrl.u32 %v959, 7
        %v961 = vsub.s32 0, %v960
        %v962 = vrot.slane %v945, %v961
        %v963 = vlaneseq
        %v964 = vshrl.u32 %v963, 7
        %v965 = vsub.s32 0, %v964
        %v966 = vrot.slane %v946, %v965
        %v975 = vunpack.c.l.b16 %v448
        %v976 = vunpack.c.l.b16 %v449
        %v977 = vunpack.c.l.b16 %v450
        %v978 = vunpack.c.l.b16 %v451
        %v979 = vpack.c.b16 %v976, %v975
        %v980 = vpack.c.b16 %v978, %v977
        %983 = vmatprep.subr.bf16.mxu0 0
        %984 = vmatpush1.bf16.msra.mxu0 %v979
        %985 = vmatprep.subr.bf16.mxu0 0
        %986 = vmatpush1.bf16.msra.mxu0 %v980
        %987 = vmatprep.subr.bf16.mxu0 0
        %988 = vmatpush1.bf16.msra.mxu0 0
        %989 = vmatprep.subr.bf16.mxu0 0
        %990 = vmatpush1.bf16.msra.mxu0 0
        %991 = vmatprep.subr.bf16.mxu0 0
        %992 = vmatpush1.bf16.msra.mxu0 0
        %993 = vmatprep.subr.bf16.mxu0 0
        %994 = vmatpush1.bf16.msra.mxu0 0
        %995 = vmatprep.subr.bf16.mxu0 0
        %996 = vmatpush1.bf16.msra.mxu0 0
        %997 = vmatprep.subr.bf16.mxu0 0
        %998 = vmatpush1.bf16.msra.mxu0 0
        %999 = vmatprep.subr.bf16.mxu0 0
        %1000 = vmatpush1.bf16.msra.mxu0 0
        %1001 = vmatprep.subr.bf16.mxu0 0
        %1002 = vmatpush1.bf16.msra.mxu0 0
        %1003 = vmatprep.subr.bf16.mxu0 0
        %1004 = vmatpush1.bf16.msra.mxu0 0
        %1005 = vmatprep.subr.bf16.mxu0 0
        %1006 = vmatpush1.bf16.msra.mxu0 0
        %1007 = vmatprep.subr.bf16.mxu0 0
        %1008 = vmatpush1.bf16.msra.mxu0 0
        %1009 = vmatprep.subr.bf16.mxu0 0
        %1010 = vmatpush1.bf16.msra.mxu0 0
        %1011 = vmatprep.subr.bf16.mxu0 0
        %1012 = vmatpush1.bf16.msra.mxu0 0
        %1013 = vmatprep.subr.bf16.mxu0 0
        %1014 = vmatpush1.bf16.msra.mxu0 0
        %1015 = vmatprep.mubr.bf16.mxu0 0
        %1016 = vmatmul.mubr.bf16.gmra.mrb[0].mxu0 %v505
        %v1017 = vpop.f32.mrb[0].mxu0
        %v1018 = vadd.f32 %v954, %v1017
        %v1019 = vpop.f32.mrb[0].mxu0
        %v1020 = vpop.f32.mrb[0].mxu0
        %v1021 = vpop.f32.mrb[0].mxu0
        %1022 = vdwg.mxu0
        %v1027 = vunpack.c.l.b16 %v452
        %v1028 = vunpack.c.l.b16 %v453
        %v1029 = vunpack.c.l.b16 %v454
        %v1030 = vunpack.c.l.b16 %v455
        %v1031 = vpack.c.b16 %v1028, %v1027
        %v1032 = vpack.c.b16 %v1030, %v1029
        %1035 = vmatprep.subr.bf16.mxu0 0
        %1036 = vmatpush1.bf16.msra.mxu0 %v1031
        %1037 = vmatprep.subr.bf16.mxu0 0
        %1038 = vmatpush1.bf16.msra.mxu0 %v1032
        %1039 = vmatprep.subr.bf16.mxu0 0
        %1040 = vmatpush1.bf16.msra.mxu0 0
        %1041 = vmatprep.subr.bf16.mxu0 0
        %1042 = vmatpush1.bf16.msra.mxu0 0
        %1043 = vmatprep.subr.bf16.mxu0 0
        %1044 = vmatpush1.bf16.msra.mxu0 0
        %1045 = vmatprep.subr.bf16.mxu0 0
        %1046 = vmatpush1.bf16.msra.mxu0 0
        %1047 = vmatprep.subr.bf16.mxu0 0
        %1048 = vmatpush1.bf16.msra.mxu0 0
        %1049 = vmatprep.subr.bf16.mxu0 0
        %1050 = vmatpush1.bf16.msra.mxu0 0
        %1051 = vmatprep.subr.bf16.mxu0 0
        %1052 = vmatpush1.bf16.msra.mxu0 0
        %1053 = vmatprep.subr.bf16.mxu0 0
        %1054 = vmatpush1.bf16.msra.mxu0 0
        %1055 = vmatprep.subr.bf16.mxu0 0
        %1056 = vmatpush1.bf16.msra.mxu0 0
        %1057 = vmatprep.subr.bf16.mxu0 0
        %1058 = vmatpush1.bf16.msra.mxu0 0
        %1059 = vmatprep.subr.bf16.mxu0 0
        %1060 = vmatpush1.bf16.msra.mxu0 0
        %1061 = vmatprep.subr.bf16.mxu0 0
        %1062 = vmatpush1.bf16.msra.mxu0 0
        %1063 = vmatprep.subr.bf16.mxu0 0
        %1064 = vmatpush1.bf16.msra.mxu0 0
        %1065 = vmatprep.subr.bf16.mxu0 0
        %1066 = vmatpush1.bf16.msra.mxu0 0
        %1067 = vmatprep.mubr.bf16.mxu0 0
        %1068 = vmatmul.mubr.bf16.gmra.mrb[0].mxu0 %v505
        %v1069 = vpop.f32.mrb[0].mxu0
        %v1070 = vadd.f32 %v958, %v1069
        %v1071 = vpop.f32.mrb[0].mxu0
        %v1072 = vpop.f32.mrb[0].mxu0
        %v1073 = vpop.f32.mrb[0].mxu0
        %1074 = vdwg.mxu0
        %v1079 = vunpack.c.l.b16 %v456
        %v1080 = vunpack.c.l.b16 %v457
        %v1081 = vunpack.c.l.b16 %v458
        %v1082 = vunpack.c.l.b16 %v459
        %v1083 = vpack.c.b16 %v1080, %v1079
        %v1084 = vpack.c.b16 %v1082, %v1081
        %1087 = vmatprep.subr.bf16.mxu0 0
        %1088 = vmatpush1.bf16.msra.mxu0 %v1083
        %1089 = vmatprep.subr.bf16.mxu0 0
        %1090 = vmatpush1.bf16.msra.mxu0 %v1084
        %1091 = vmatprep.subr.bf16.mxu0 0
        %1092 = vmatpush1.bf16.msra.mxu0 0
        %1093 = vmatprep.subr.bf16.mxu0 0
        %1094 = vmatpush1.bf16.msra.mxu0 0
        %1095 = vmatprep.subr.bf16.mxu0 0
        %1096 = vmatpush1.bf16.msra.mxu0 0
        %1097 = vmatprep.subr.bf16.mxu0 0
        %1098 = vmatpush1.bf16.msra.mxu0 0
        %1099 = vmatprep.subr.bf16.mxu0 0
        %1100 = vmatpush1.bf16.msra.mxu0 0
        %1101 = vmatprep.subr.bf16.mxu0 0
        %1102 = vmatpush1.bf16.msra.mxu0 0
        %1103 = vmatprep.subr.bf16.mxu0 0
        %1104 = vmatpush1.bf16.msra.mxu0 0
        %1105 = vmatprep.subr.bf16.mxu0 0
        %1106 = vmatpush1.bf16.msra.mxu0 0
        %1107 = vmatprep.subr.bf16.mxu0 0
        %1108 = vmatpush1.bf16.msra.mxu0 0
        %1109 = vmatprep.subr.bf16.mxu0 0
        %1110 = vmatpush1.bf16.msra.mxu0 0
        %1111 = vmatprep.subr.bf16.mxu0 0
        %1112 = vmatpush1.bf16.msra.mxu0 0
        %1113 = vmatprep.subr.bf16.mxu0 0
        %1114 = vmatpush1.bf16.msra.mxu0 0
        %1115 = vmatprep.subr.bf16.mxu0 0
        %1116 = vmatpush1.bf16.msra.mxu0 0
        %1117 = vmatprep.subr.bf16.mxu0 0
        %1118 = vmatpush1.bf16.msra.mxu0 0
        %1119 = vmatprep.mubr.bf16.mxu0 0
        %1120 = vmatmul.mubr.bf16.gmra.mrb[0].mxu0 %v505
        %v1121 = vpop.f32.mrb[0].mxu0
        %v1122 = vadd.f32 %v962, %v1121
        %v1123 = vpop.f32.mrb[0].mxu0
        %v1124 = vpop.f32.mrb[0].mxu0
        %v1125 = vpop.f32.mrb[0].mxu0
        %1126 = vdwg.mxu0
        %v1131 = vunpack.c.l.b16 %v460
        %v1132 = vunpack.c.l.b16 %v461
        %v1133 = vunpack.c.l.b16 %v462
        %v1134 = vunpack.c.l.b16 %v463
        %v1135 = vpack.c.b16 %v1132, %v1131
        %v1136 = vpack.c.b16 %v1134, %v1133
        %1139 = vmatprep.subr.bf16.mxu0 0
        %1140 = vmatpush1.bf16.msra.mxu0 %v1135
        %1141 = vmatprep.subr.bf16.mxu0 0
        %1142 = vmatpush1.bf16.msra.mxu0 %v1136
        %1143 = vmatprep.subr.bf16.mxu0 0
        %1144 = vmatpush1.bf16.msra.mxu0 0
        %1145 = vmatprep.subr.bf16.mxu0 0
        %1146 = vmatpush1.bf16.msra.mxu0 0
        %1147 = vmatprep.subr.bf16.mxu0 0
        %1148 = vmatpush1.bf16.msra.mxu0 0
        %1149 = vmatprep.subr.bf16.mxu0 0
        %1150 = vmatpush1.bf16.msra.mxu0 0
        %1151 = vmatprep.subr.bf16.mxu0 0
        %1152 = vmatpush1.bf16.msra.mxu0 0
        %1153 = vmatprep.subr.bf16.mxu0 0
        %1154 = vmatpush1.bf16.msra.mxu0 0
        %1155 = vmatprep.subr.bf16.mxu0 0
        %1156 = vmatpush1.bf16.msra.mxu0 0
        %1157 = vmatprep.subr.bf16.mxu0 0
        %1158 = vmatpush1.bf16.msra.mxu0 0
        %1159 = vmatprep.subr.bf16.mxu0 0
        %1160 = vmatpush1.bf16.msra.mxu0 0
        %1161 = vmatprep.subr.bf16.mxu0 0
        %1162 = vmatpush1.bf16.msra.mxu0 0
        %1163 = vmatprep.subr.bf16.mxu0 0
        %1164 = vmatpush1.bf16.msra.mxu0 0
        %1165 = vmatprep.subr.bf16.mxu0 0
        %1166 = vmatpush1.bf16.msra.mxu0 0
        %1167 = vmatprep.subr.bf16.mxu0 0
        %1168 = vmatpush1.bf16.msra.mxu0 0
        %1169 = vmatprep.subr.bf16.mxu0 0
        %1170 = vmatpush1.bf16.msra.mxu0 0
        %1171 = vmatprep.mubr.bf16.mxu0 0
        %1172 = vmatmul.mubr.bf16.gmra.mrb[0].mxu0 %v505
        %v1173 = vpop.f32.mrb[0].mxu0
        %v1174 = vadd.f32 %v966, %v1173
        %v1175 = vpop.f32.mrb[0].mxu0
        %v1176 = vpop.f32.mrb[0].mxu0
        %v1177 = vpop.f32.mrb[0].mxu0
        %1178 = vdwg.mxu0
        %v1179 = vpack.c.bf16 %v703, %v703
        %v1180 = vpack.c.bf16 %v704, %v704
        %v1181 = vpack.c.bf16 %v705, %v705
        %v1182 = vpack.c.bf16 %v706, %v706
        %v1183 = vpack.c.bf16 %v782, %v782
        %v1184 = vpack.c.bf16 %v834, %v834
        %v1185 = vpack.c.bf16 %v886, %v886
        %v1186 = vpack.c.bf16 %v938, %v938
        %v1187 = vpack.c.bf16 %v1018, %v1018
        %v1188 = vpack.c.bf16 %v1070, %v1070
        %v1189 = vpack.c.bf16 %v1122, %v1122
        %v1190 = vpack.c.bf16 %v1174, %v1174
        %vm1191 = vcmask 64512
        %v1193 = vsel %vm1191, %v1179, 0
        %v1196 = vsel %vm1191, %v1183, 0
        %1198 = vmatprep.subr.bf16.mxu0 0
        %1199 = vmatpush1.bf16.xpose.msra.mxu0 %v1196
        %1200 = vmatprep.subr.bf16.mxu0 0
        %1201 = vmatpush1.bf16.xpose.msra.mxu0 0
        %1202 = vmatprep.subr.bf16.mxu0 0
        %1203 = vmatpush1.bf16.xpose.msra.mxu0 0
        %1204 = vmatprep.subr.bf16.mxu0 0
        %1205 = vmatpush1.bf16.xpose.msra.mxu0 0
        %1206 = vmatprep.subr.bf16.mxu0 0
        %1207 = vmatpush1.bf16.xpose.msra.mxu0 0
        %1208 = vmatprep.subr.bf16.mxu0 0
        %1209 = vmatpush1.bf16.xpose.msra.mxu0 0
        %1210 = vmatprep.subr.bf16.mxu0 0
        %1211 = vmatpush1.bf16.xpose.msra.mxu0 0
        %1212 = vmatprep.subr.bf16.mxu0 0
        %1213 = vmatpush1.bf16.xpose.msra.mxu0 0
        %1214 = vmatprep.subr.bf16.mxu0 0
        %1215 = vmatpush1.bf16.xpose.msra.mxu0 0
        %1216 = vmatprep.subr.bf16.mxu0 0
        %1217 = vmatpush1.bf16.xpose.msra.mxu0 0
        %1218 = vmatprep.subr.bf16.mxu0 0
        %1219 = vmatpush1.bf16.xpose.msra.mxu0 0
        %1220 = vmatprep.subr.bf16.mxu0 0
        %1221 = vmatpush1.bf16.xpose.msra.mxu0 0
        %1222 = vmatprep.subr.bf16.mxu0 0
        %1223 = vmatpush1.bf16.xpose.msra.mxu0 0
        %1224 = vmatprep.subr.bf16.mxu0 0
        %1225 = vmatpush1.bf16.xpose.msra.mxu0 0
        %1226 = vmatprep.subr.bf16.mxu0 0
        %1227 = vmatpush1.bf16.xpose.msra.mxu0 0
        %1228 = vmatprep.subr.bf16.mxu0 0
        %1229 = vmatpush1.bf16.xpose.msra.mxu0 0
        %1230 = vmatprep.mubr.bf16.mxu0 0
        %1231 = vmatmul.mubr.bf16.gmra.mrb[0].mxu0 %v1193
        %v1232 = vpop.f32.mrb[0].mxu0
        %v1233 = vadd.f32 0.0, %v1232
        %v1234 = vpop.f32.mrb[0].mxu0
        %v1235 = vpop.f32.mrb[0].mxu0
        %v1236 = vpop.f32.mrb[0].mxu0
        %1237 = vdwg.mxu0
        %v1239 = vsel %vm1191, %v1180, 0
        %v1242 = vsel %vm1191, %v1184, 0
        %1244 = vmatprep.subr.bf16.mxu0 0
        %1245 = vmatpush1.bf16.xpose.msra.mxu0 %v1242
        %1246 = vmatprep.subr.bf16.mxu0 0
        %1247 = vmatpush1.bf16.xpose.msra.mxu0 0
        %1248 = vmatprep.subr.bf16.mxu0 0
        %1249 = vmatpush1.bf16.xpose.msra.mxu0 0
        %1250 = vmatprep.subr.bf16.mxu0 0
        %1251 = vmatpush1.bf16.xpose.msra.mxu0 0
        %1252 = vmatprep.subr.bf16.mxu0 0
        %1253 = vmatpush1.bf16.xpose.msra.mxu0 0
        %1254 = vmatprep.subr.bf16.mxu0 0
        %1255 = vmatpush1.bf16.xpose.msra.mxu0 0
        %1256 = vmatprep.subr.bf16.mxu0 0
        %1257 = vmatpush1.bf16.xpose.msra.mxu0 0
        %1258 = vmatprep.subr.bf16.mxu0 0
        %1259 = vmatpush1.bf16.xpose.msra.mxu0 0
        %1260 = vmatprep.subr.bf16.mxu0 0
        %1261 = vmatpush1.bf16.xpose.msra.mxu0 0
        %1262 = vmatprep.subr.bf16.mxu0 0
        %1263 = vmatpush1.bf16.xpose.msra.mxu0 0
        %1264 = vmatprep.subr.bf16.mxu0 0
        %1265 = vmatpush1.bf16.xpose.msra.mxu0 0
        %1266 = vmatprep.subr.bf16.mxu0 0
        %1267 = vmatpush1.bf16.xpose.msra.mxu0 0
        %1268 = vmatprep.subr.bf16.mxu0 0
        %1269 = vmatpush1.bf16.xpose.msra.mxu0 0
        %1270 = vmatprep.subr.bf16.mxu0 0
        %1271 = vmatpush1.bf16.xpose.msra.mxu0 0
        %1272 = vmatprep.subr.bf16.mxu0 0
        %1273 = vmatpush1.bf16.xpose.msra.mxu0 0
        %1274 = vmatprep.subr.bf16.mxu0 0
        %1275 = vmatpush1.bf16.xpose.msra.mxu0 0
        %1276 = vmatprep.mubr.bf16.mxu0 0
        %1277 = vmatmul.mubr.bf16.gmra.mrb[0].mxu0 %v1239
        %v1278 = vpop.f32.mrb[0].mxu0
        %v1279 = vadd.f32 0.0, %v1278
        %v1280 = vpop.f32.mrb[0].mxu0
        %v1281 = vpop.f32.mrb[0].mxu0
        %v1282 = vpop.f32.mrb[0].mxu0
        %1283 = vdwg.mxu0
        %v1285 = vsel %vm1191, %v1181, 0
        %v1288 = vsel %vm1191, %v1185, 0
        %1290 = vmatprep.subr.bf16.mxu0 0
        %1291 = vmatpush1.bf16.xpose.msra.mxu0 %v1288
        %1292 = vmatprep.subr.bf16.mxu0 0
        %1293 = vmatpush1.bf16.xpose.msra.mxu0 0
        %1294 = vmatprep.subr.bf16.mxu0 0
        %1295 = vmatpush1.bf16.xpose.msra.mxu0 0
        %1296 = vmatprep.subr.bf16.mxu0 0
        %1297 = vmatpush1.bf16.xpose.msra.mxu0 0
        %1298 = vmatprep.subr.bf16.mxu0 0
        %1299 = vmatpush1.bf16.xpose.msra.mxu0 0
        %1300 = vmatprep.subr.bf16.mxu0 0
        %1301 = vmatpush1.bf16.xpose.msra.mxu0 0
        %1302 = vmatprep.subr.bf16.mxu0 0
        %1303 = vmatpush1.bf16.xpose.msra.mxu0 0
        %1304 = vmatprep.subr.bf16.mxu0 0
        %1305 = vmatpush1.bf16.xpose.msra.mxu0 0
        %1306 = vmatprep.subr.bf16.mxu0 0
        %1307 = vmatpush1.bf16.xpose.msra.mxu0 0
        %1308 = vmatprep.subr.bf16.mxu0 0
        %1309 = vmatpush1.bf16.xpose.msra.mxu0 0
        %1310 = vmatprep.subr.bf16.mxu0 0
        %1311 = vmatpush1.bf16.xpose.msra.mxu0 0
        %1312 = vmatprep.subr.bf16.mxu0 0
        %1313 = vmatpush1.bf16.xpose.msra.mxu0 0
        %1314 = vmatprep.subr.bf16.mxu0 0
        %1315 = vmatpush1.bf16.xpose.msra.mxu0 0
        %1316 = vmatprep.subr.bf16.mxu0 0
        %1317 = vmatpush1.bf16.xpose.msra.mxu0 0
        %1318 = vmatprep.subr.bf16.mxu0 0
        %1319 = vmatpush1.bf16.xpose.msra.mxu0 0
        %1320 = vmatprep.subr.bf16.mxu0 0
        %1321 = vmatpush1.bf16.xpose.msra.mxu0 0
        %1322 = vmatprep.mubr.bf16.mxu0 0
        %1323 = vmatmul.mubr.bf16.gmra.mrb[0].mxu0 %v1285
        %v1324 = vpop.f32.mrb[0].mxu0
        %v1325 = vadd.f32 0.0, %v1324
        %v1326 = vpop.f32.mrb[0].mxu0
        %v1327 = vpop.f32.mrb[0].mxu0
        %v1328 = vpop.f32.mrb[0].mxu0
        %1329 = vdwg.mxu0
        %v1331 = vsel %vm1191, %v1182, 0
        %v1334 = vsel %vm1191, %v1186, 0
        %1336 = vmatprep.subr.bf16.mxu0 0
        %1337 = vmatpush1.bf16.xpose.msra.mxu0 %v1334
        %1338 = vmatprep.subr.bf16.mxu0 0
        %1339 = vmatpush1.bf16.xpose.msra.mxu0 0
        %1340 = vmatprep.subr.bf16.mxu0 0
        %1341 = vmatpush1.bf16.xpose.msra.mxu0 0
        %1342 = vmatprep.subr.bf16.mxu0 0
        %1343 = vmatpush1.bf16.xpose.msra.mxu0 0
        %1344 = vmatprep.subr.bf16.mxu0 0
        %1345 = vmatpush1.bf16.xpose.msra.mxu0 0
        %1346 = vmatprep.subr.bf16.mxu0 0
        %1347 = vmatpush1.bf16.xpose.msra.mxu0 0
        %1348 = vmatprep.subr.bf16.mxu0 0
        %1349 = vmatpush1.bf16.xpose.msra.mxu0 0
        %1350 = vmatprep.subr.bf16.mxu0 0
        %1351 = vmatpush1.bf16.xpose.msra.mxu0 0
        %1352 = vmatprep.subr.bf16.mxu0 0
        %1353 = vmatpush1.bf16.xpose.msra.mxu0 0
        %1354 = vmatprep.subr.bf16.mxu0 0
        %1355 = vmatpush1.bf16.xpose.msra.mxu0 0
        %1356 = vmatprep.subr.bf16.mxu0 0
        %1357 = vmatpush1.bf16.xpose.msra.mxu0 0
        %1358 = vmatprep.subr.bf16.mxu0 0
        %1359 = vmatpush1.bf16.xpose.msra.mxu0 0
        %1360 = vmatprep.subr.bf16.mxu0 0
        %1361 = vmatpush1.bf16.xpose.msra.mxu0 0
        %1362 = vmatprep.subr.bf16.mxu0 0
        %1363 = vmatpush1.bf16.xpose.msra.mxu0 0
        %1364 = vmatprep.subr.bf16.mxu0 0
        %1365 = vmatpush1.bf16.xpose.msra.mxu0 0
        %1366 = vmatprep.subr.bf16.mxu0 0
        %1367 = vmatpush1.bf16.xpose.msra.mxu0 0
        %1368 = vmatprep.mubr.bf16.mxu0 0
        %1369 = vmatmul.mubr.bf16.gmra.mrb[0].mxu0 %v1331
        %v1370 = vpop.f32.mrb[0].mxu0
        %v1371 = vadd.f32 0.0, %v1370
        %v1372 = vpop.f32.mrb[0].mxu0
        %v1373 = vpop.f32.mrb[0].mxu0
        %v1374 = vpop.f32.mrb[0].mxu0
        %1375 = vdwg.mxu0
        %v1376 = vsel %vm1191, %v1233, -inf
        %1377 = vmax.xlane.f32.xlu0 %v1376
        %v1378 = vpop.xlane.xlu0 %1377
        %v1379 = vsel %vm1191, %v1279, -inf
        %1380 = vmax.xlane.f32.xlu0 %v1379
        %v1381 = vpop.xlane.xlu0 %1380
        %v1382 = vsel %vm1191, %v1325, -inf
        %1383 = vmax.xlane.f32.xlu0 %v1382
        %v1384 = vpop.xlane.xlu0 %1383
        %v1385 = vsel %vm1191, %v1371, -inf
        %1386 = vmax.xlane.f32.xlu0 %v1385
        %v1387 = vpop.xlane.xlu0 %1386
        %v1388 = vsub.f32 %v1233, %v1378
        %v1389 = vsub.f32 %v1279, %v1381
        %v1390 = vsub.f32 %v1325, %v1384
        %v1391 = vsub.f32 %v1371, %v1387
        %v1392 = vmul.f32 %v1388, 1.442695
        %v1393 = vpow.pop %v1392
        %v1394 = vmul.f32 %v1389, 1.442695
        %v1395 = vpow.pop %v1394
        %v1396 = vmul.f32 %v1390, 1.442695
        %v1397 = vpow.pop %v1396
        %v1398 = vmul.f32 %v1391, 1.442695
        %v1399 = vpow.pop %v1398
        %v1400 = vsel %vm1191, %v1393, 0.0
        %1401 = vadd.xlane.f32.xlu0 %v1400
        %v1402 = vpop.xlane.xlu0 %1401
        %v1403 = vsel %vm1191, %v1395, 0.0
        %1404 = vadd.xlane.f32.xlu0 %v1403
        %v1405 = vpop.xlane.xlu0 %1404
        %v1406 = vsel %vm1191, %v1397, 0.0
        %1407 = vadd.xlane.f32.xlu0 %v1406
        %v1408 = vpop.xlane.xlu0 %1407
        %v1409 = vsel %vm1191, %v1399, 0.0
        %1410 = vadd.xlane.f32.xlu0 %v1409
        %v1411 = vpop.xlane.xlu0 %1410
        %v1412 = vpack.c.bf16 %v1393, %v1393
        %v1413 = vpack.c.bf16 %v1395, %v1395
        %v1414 = vpack.c.bf16 %v1397, %v1397
        %v1415 = vpack.c.bf16 %v1399, %v1399
        %v1417 = vsel %vm1191, %v1412, 0
        %vm1419 = vcmask 1043456
        %v1421 = vsel %vm1419, %v1187, 0
        %1423 = vmatprep.subr.bf16.mxu0 0
        %1424 = vmatpush1.bf16.msra.mxu0 %v1421
        %1425 = vmatprep.subr.bf16.mxu0 0
        %1426 = vmatpush1.bf16.msra.mxu0 0
        %1427 = vmatprep.subr.bf16.mxu0 0
        %1428 = vmatpush1.bf16.msra.mxu0 0
        %1429 = vmatprep.subr.bf16.mxu0 0
        %1430 = vmatpush1.bf16.msra.mxu0 0
        %1431 = vmatprep.subr.bf16.mxu0 0
        %1432 = vmatpush1.bf16.msra.mxu0 0
        %1433 = vmatprep.subr.bf16.mxu0 0
        %1434 = vmatpush1.bf16.msra.mxu0 0
        %1435 = vmatprep.subr.bf16.mxu0 0
        %1436 = vmatpush1.bf16.msra.mxu0 0
        %1437 = vmatprep.subr.bf16.mxu0 0
        %1438 = vmatpush1.bf16.msra.mxu0 0
        %1439 = vmatprep.subr.bf16.mxu0 0
        %1440 = vmatpush1.bf16.msra.mxu0 0
        %1441 = vmatprep.subr.bf16.mxu0 0
        %1442 = vmatpush1.bf16.msra.mxu0 0
        %1443 = vmatprep.subr.bf16.mxu0 0
        %1444 = vmatpush1.bf16.msra.mxu0 0
        %1445 = vmatprep.subr.bf16.mxu0 0
        %1446 = vmatpush1.bf16.msra.mxu0 0
        %1447 = vmatprep.subr.bf16.mxu0 0
        %1448 = vmatpush1.bf16.msra.mxu0 0
        %1449 = vmatprep.subr.bf16.mxu0 0
        %1450 = vmatpush1.bf16.msra.mxu0 0
        %1451 = vmatprep.subr.bf16.mxu0 0
        %1452 = vmatpush1.bf16.msra.mxu0 0
        %1453 = vmatprep.subr.bf16.mxu0 0
        %1454 = vmatpush1.bf16.msra.mxu0 0
        %1455 = vmatprep.mubr.bf16.mxu0 0
        %1456 = vmatmul.mubr.bf16.gmra.mrb[0].mxu0 %v1417
        %v1457 = vpop.f32.mrb[0].mxu0
        %v1458 = vadd.f32 0.0, %v1457
        %v1459 = vpop.f32.mrb[0].mxu0
        %v1460 = vpop.f32.mrb[0].mxu0
        %v1461 = vpop.f32.mrb[0].mxu0
        %1462 = vdwg.mxu0
        %v1464 = vsel %vm1191, %v1413, 0
        %v1467 = vsel %vm1419, %v1188, 0
        %1469 = vmatprep.subr.bf16.mxu0 0
        %1470 = vmatpush1.bf16.msra.mxu0 %v1467
        %1471 = vmatprep.subr.bf16.mxu0 0
        %1472 = vmatpush1.bf16.msra.mxu0 0
        %1473 = vmatprep.subr.bf16.mxu0 0
        %1474 = vmatpush1.bf16.msra.mxu0 0
        %1475 = vmatprep.subr.bf16.mxu0 0
        %1476 = vmatpush1.bf16.msra.mxu0 0
        %1477 = vmatprep.subr.bf16.mxu0 0
        %1478 = vmatpush1.bf16.msra.mxu0 0
        %1479 = vmatprep.subr.bf16.mxu0 0
        %1480 = vmatpush1.bf16.msra.mxu0 0
        %1481 = vmatprep.subr.bf16.mxu0 0
        %1482 = vmatpush1.bf16.msra.mxu0 0
        %1483 = vmatprep.subr.bf16.mxu0 0
        %1484 = vmatpush1.bf16.msra.mxu0 0
        %1485 = vmatprep.subr.bf16.mxu0 0
        %1486 = vmatpush1.bf16.msra.mxu0 0
        %1487 = vmatprep.subr.bf16.mxu0 0
        %1488 = vmatpush1.bf16.msra.mxu0 0
        %1489 = vmatprep.subr.bf16.mxu0 0
        %1490 = vmatpush1.bf16.msra.mxu0 0
        %1491 = vmatprep.subr.bf16.mxu0 0
        %1492 = vmatpush1.bf16.msra.mxu0 0
        %1493 = vmatprep.subr.bf16.mxu0 0
        %1494 = vmatpush1.bf16.msra.mxu0 0
        %1495 = vmatprep.subr.bf16.mxu0 0
        %1496 = vmatpush1.bf16.msra.mxu0 0
        %1497 = vmatprep.subr.bf16.mxu0 0
        %1498 = vmatpush1.bf16.msra.mxu0 0
        %1499 = vmatprep.subr.bf16.mxu0 0
        %1500 = vmatpush1.bf16.msra.mxu0 0
        %1501 = vmatprep.mubr.bf16.mxu0 0
        %1502 = vmatmul.mubr.bf16.gmra.mrb[0].mxu0 %v1464
        %v1503 = vpop.f32.mrb[0].mxu0
        %v1504 = vadd.f32 0.0, %v1503
        %v1505 = vpop.f32.mrb[0].mxu0
        %v1506 = vpop.f32.mrb[0].mxu0
        %v1507 = vpop.f32.mrb[0].mxu0
        %1508 = vdwg.mxu0
        %v1510 = vsel %vm1191, %v1414, 0
        %v1513 = vsel %vm1419, %v1189, 0
        %1515 = vmatprep.subr.bf16.mxu0 0
        %1516 = vmatpush1.bf16.msra.mxu0 %v1513
        %1517 = vmatprep.subr.bf16.mxu0 0
        %1518 = vmatpush1.bf16.msra.mxu0 0
        %1519 = vmatprep.subr.bf16.mxu0 0
        %1520 = vmatpush1.bf16.msra.mxu0 0
        %1521 = vmatprep.subr.bf16.mxu0 0
        %1522 = vmatpush1.bf16.msra.mxu0 0
        %1523 = vmatprep.subr.bf16.mxu0 0
        %1524 = vmatpush1.bf16.msra.mxu0 0
        %1525 = vmatprep.subr.bf16.mxu0 0
        %1526 = vmatpush1.bf16.msra.mxu0 0
        %1527 = vmatprep.subr.bf16.mxu0 0
        %1528 = vmatpush1.bf16.msra.mxu0 0
        %1529 = vmatprep.subr.bf16.mxu0 0
        %1530 = vmatpush1.bf16.msra.mxu0 0
        %1531 = vmatprep.subr.bf16.mxu0 0
        %1532 = vmatpush1.bf16.msra.mxu0 0
        %1533 = vmatprep.subr.bf16.mxu0 0
        %1534 = vmatpush1.bf16.msra.mxu0 0
        %1535 = vmatprep.subr.bf16.mxu0 0
        %1536 = vmatpush1.bf16.msra.mxu0 0
        %1537 = vmatprep.subr.bf16.mxu0 0
        %1538 = vmatpush1.bf16.msra.mxu0 0
        %1539 = vmatprep.subr.bf16.mxu0 0
        %1540 = vmatpush1.bf16.msra.mxu0 0
        %1541 = vmatprep.subr.bf16.mxu0 0
        %1542 = vmatpush1.bf16.msra.mxu0 0
        %1543 = vmatprep.subr.bf16.mxu0 0
        %1544 = vmatpush1.bf16.msra.mxu0 0
        %1545 = vmatprep.subr.bf16.mxu0 0
        %1546 = vmatpush1.bf16.msra.mxu0 0
        %1547 = vmatprep.mubr.bf16.mxu0 0
        %1548 = vmatmul.mubr.bf16.gmra.mrb[0].mxu0 %v1510
        %v1549 = vpop.f32.mrb[0].mxu0
        %v1550 = vadd.f32 0.0, %v1549
        %v1551 = vpop.f32.mrb[0].mxu0
        %v1552 = vpop.f32.mrb[0].mxu0
        %v1553 = vpop.f32.mrb[0].mxu0
        %1554 = vdwg.mxu0
        %v1556 = vsel %vm1191, %v1415, 0
        %v1559 = vsel %vm1419, %v1190, 0
        %1561 = vmatprep.subr.bf16.mxu0 0
        %1562 = vmatpush1.bf16.msra.mxu0 %v1559
        %1563 = vmatprep.subr.bf16.mxu0 0
        %1564 = vmatpush1.bf16.msra.mxu0 0
        %1565 = vmatprep.subr.bf16.mxu0 0
        %1566 = vmatpush1.bf16.msra.mxu0 0
        %1567 = vmatprep.subr.bf16.mxu0 0
        %1568 = vmatpush1.bf16.msra.mxu0 0
        %1569 = vmatprep.subr.bf16.mxu0 0
        %1570 = vmatpush1.bf16.msra.mxu0 0
        %1571 = vmatprep.subr.bf16.mxu0 0
        %1572 = vmatpush1.bf16.msra.mxu0 0
        %1573 = vmatprep.subr.bf16.mxu0 0
        %1574 = vmatpush1.bf16.msra.mxu0 0
        %1575 = vmatprep.subr.bf16.mxu0 0
        %1576 = vmatpush1.bf16.msra.mxu0 0
        %1577 = vmatprep.subr.bf16.mxu0 0
        %1578 = vmatpush1.bf16.msra.mxu0 0
        %1579 = vmatprep.subr.bf16.mxu0 0
        %1580 = vmatpush1.bf16.msra.mxu0 0
        %1581 = vmatprep.subr.bf16.mxu0 0
        %1582 = vmatpush1.bf16.msra.mxu0 0
        %1583 = vmatprep.subr.bf16.mxu0 0
        %1584 = vmatpush1.bf16.msra.mxu0 0
        %1585 = vmatprep.subr.bf16.mxu0 0
        %1586 = vmatpush1.bf16.msra.mxu0 0
        %1587 = vmatprep.subr.bf16.mxu0 0
        %1588 = vmatpush1.bf16.msra.mxu0 0
        %1589 = vmatprep.subr.bf16.mxu0 0
        %1590 = vmatpush1.bf16.msra.mxu0 0
        %1591 = vmatprep.subr.bf16.mxu0 0
        %1592 = vmatpush1.bf16.msra.mxu0 0
        %1593 = vmatprep.mubr.bf16.mxu0 0
        %1594 = vmatmul.mubr.bf16.gmra.mrb[0].mxu0 %v1556
        %v1595 = vpop.f32.mrb[0].mxu0
        %v1596 = vadd.f32 0.0, %v1595
        %v1597 = vpop.f32.mrb[0].mxu0
        %v1598 = vpop.f32.mrb[0].mxu0
        %v1599 = vpop.f32.mrb[0].mxu0
        %1600 = vdwg.mxu0
        %v1601 = vrcp.pop %v1402
        %v1602 = vrcp.pop %v1405
        %v1603 = vrcp.pop %v1408
        %v1604 = vrcp.pop %v1411
        %v1605 = vmul.f32 %v1458, %v1601
        %v1606 = vmul.f32 %v1504, %v1602
        %v1607 = vmul.f32 %v1550, %v1603
        %v1608 = vmul.f32 %v1596, %v1604
        %v1609 = vpack.c.bf16 %v1605, %v1605
        %v1610 = vpack.c.bf16 %v1606, %v1606
        %v1611 = vpack.c.bf16 %v1607, %v1607
        %v1612 = vpack.c.bf16 %v1608, %v1608
        %v1613 = vld [vmem:[%s9] sm:$0xf]
        %v1614 = vld [vmem:[%s9 + $0x4] sm:$0xf]
        %v1615 = vld [vmem:[%s9 + $0x8] sm:$0xf]
        %v1616 = vld [vmem:[%s9 + $0xc] sm:$0xf]
        %v1618 = vsel %vm1191, %v1609, 0
        %v1621 = vsel %vm1419, %v1613, 0
        %1623 = vmatprep.subr.bf16.mxu0 0
        %1624 = vmatpush1.bf16.msra.mxu0 %v1621
        %1625 = vmatprep.subr.bf16.mxu0 0
        %1626 = vmatpush1.bf16.msra.mxu0 0
        %1627 = vmatprep.subr.bf16.mxu0 0
        %1628 = vmatpush1.bf16.msra.mxu0 0
        %1629 = vmatprep.subr.bf16.mxu0 0
        %1630 = vmatpush1.bf16.msra.mxu0 0
        %1631 = vmatprep.subr.bf16.mxu0 0
        %1632 = vmatpush1.bf16.msra.mxu0 0
        %1633 = vmatprep.subr.bf16.mxu0 0
        %1634 = vmatpush1.bf16.msra.mxu0 0
        %1635 = vmatprep.subr.bf16.mxu0 0
        %1636 = vmatpush1.bf16.msra.mxu0 0
        %1637 = vmatprep.subr.bf16.mxu0 0
        %1638 = vmatpush1.bf16.msra.mxu0 0
        %1639 = vmatprep.subr.bf16.mxu0 0
        %1640 = vmatpush1.bf16.msra.mxu0 0
        %1641 = vmatprep.subr.bf16.mxu0 0
        %1642 = vmatpush1.bf16.msra.mxu0 0
        %1643 = vmatprep.subr.bf16.mxu0 0
        %1644 = vmatpush1.bf16.msra.mxu0 0
        %1645 = vmatprep.subr.bf16.mxu0 0
        %1646 = vmatpush1.bf16.msra.mxu0 0
        %1647 = vmatprep.subr.bf16.mxu0 0
        %1648 = vmatpush1.bf16.msra.mxu0 0
        %1649 = vmatprep.subr.bf16.mxu0 0
        %1650 = vmatpush1.bf16.msra.mxu0 0
        %1651 = vmatprep.subr.bf16.mxu0 0
        %1652 = vmatpush1.bf16.msra.mxu0 0
        %1653 = vmatprep.subr.bf16.mxu0 0
        %1654 = vmatpush1.bf16.msra.mxu0 0
        %1655 = vmatprep.mubr.bf16.mxu0 0
        %1656 = vmatmul.mubr.bf16.gmra.mrb[0].mxu0 %v1618
        %v1657 = vpop.f32.mrb[0].mxu0
        %v1658 = vadd.f32 0.0, %v1657
        %v1659 = vpop.f32.mrb[0].mxu0
        %v1660 = vpop.f32.mrb[0].mxu0
        %v1661 = vpop.f32.mrb[0].mxu0
        %1662 = vdwg.mxu0
        %v1664 = vsel %vm1191, %v1610, 0
        %v1667 = vsel %vm1419, %v1614, 0
        %1669 = vmatprep.subr.bf16.mxu0 0
        %1670 = vmatpush1.bf16.msra.mxu0 %v1667
        %1671 = vmatprep.subr.bf16.mxu0 0
        %1672 = vmatpush1.bf16.msra.mxu0 0
        %1673 = vmatprep.subr.bf16.mxu0 0
        %1674 = vmatpush1.bf16.msra.mxu0 0
        %1675 = vmatprep.subr.bf16.mxu0 0
        %1676 = vmatpush1.bf16.msra.mxu0 0
        %1677 = vmatprep.subr.bf16.mxu0 0
        %1678 = vmatpush1.bf16.msra.mxu0 0
        %1679 = vmatprep.subr.bf16.mxu0 0
        %1680 = vmatpush1.bf16.msra.mxu0 0
        %1681 = vmatprep.subr.bf16.mxu0 0
        %1682 = vmatpush1.bf16.msra.mxu0 0
        %1683 = vmatprep.subr.bf16.mxu0 0
        %1684 = vmatpush1.bf16.msra.mxu0 0
        %1685 = vmatprep.subr.bf16.mxu0 0
        %1686 = vmatpush1.bf16.msra.mxu0 0
        %1687 = vmatprep.subr.bf16.mxu0 0
        %1688 = vmatpush1.bf16.msra.mxu0 0
        %1689 = vmatprep.subr.bf16.mxu0 0
        %1690 = vmatpush1.bf16.msra.mxu0 0
        %1691 = vmatprep.subr.bf16.mxu0 0
        %1692 = vmatpush1.bf16.msra.mxu0 0
        %1693 = vmatprep.subr.bf16.mxu0 0
        %1694 = vmatpush1.bf16.msra.mxu0 0
        %1695 = vmatprep.subr.bf16.mxu0 0
        %1696 = vmatpush1.bf16.msra.mxu0 0
        %1697 = vmatprep.subr.bf16.mxu0 0
        %1698 = vmatpush1.bf16.msra.mxu0 0
        %1699 = vmatprep.subr.bf16.mxu0 0
        %1700 = vmatpush1.bf16.msra.mxu0 0
        %1701 = vmatprep.mubr.bf16.mxu0 0
        %1702 = vmatmul.mubr.bf16.gmra.mrb[0].mxu0 %v1664
        %v1703 = vpop.f32.mrb[0].mxu0
        %v1704 = vadd.f32 0.0, %v1703
        %v1705 = vpop.f32.mrb[0].mxu0
        %v1706 = vpop.f32.mrb[0].mxu0
        %v1707 = vpop.f32.mrb[0].mxu0
        %1708 = vdwg.mxu0
        %v1710 = vsel %vm1191, %v1611, 0
        %v1713 = vsel %vm1419, %v1615, 0
        %1715 = vmatprep.subr.bf16.mxu0 0
        %1716 = vmatpush1.bf16.msra.mxu0 %v1713
        %1717 = vmatprep.subr.bf16.mxu0 0
        %1718 = vmatpush1.bf16.msra.mxu0 0
        %1719 = vmatprep.subr.bf16.mxu0 0
        %1720 = vmatpush1.bf16.msra.mxu0 0
        %1721 = vmatprep.subr.bf16.mxu0 0
        %1722 = vmatpush1.bf16.msra.mxu0 0
        %1723 = vmatprep.subr.bf16.mxu0 0
        %1724 = vmatpush1.bf16.msra.mxu0 0
        %1725 = vmatprep.subr.bf16.mxu0 0
        %1726 = vmatpush1.bf16.msra.mxu0 0
        %1727 = vmatprep.subr.bf16.mxu0 0
        %1728 = vmatpush1.bf16.msra.mxu0 0
        %1729 = vmatprep.subr.bf16.mxu0 0
        %1730 = vmatpush1.bf16.msra.mxu0 0
        %1731 = vmatprep.subr.bf16.mxu0 0
        %1732 = vmatpush1.bf16.msra.mxu0 0
        %1733 = vmatprep.subr.bf16.mxu0 0
        %1734 = vmatpush1.bf16.msra.mxu0 0
        %1735 = vmatprep.subr.bf16.mxu0 0
        %1736 = vmatpush1.bf16.msra.mxu0 0
        %1737 = vmatprep.subr.bf16.mxu0 0
        %1738 = vmatpush1.bf16.msra.mxu0 0
        %1739 = vmatprep.subr.bf16.mxu0 0
        %1740 = vmatpush1.bf16.msra.mxu0 0
        %1741 = vmatprep.subr.bf16.mxu0 0
        %1742 = vmatpush1.bf16.msra.mxu0 0
        %1743 = vmatprep.subr.bf16.mxu0 0
        %1744 = vmatpush1.bf16.msra.mxu0 0
        %1745 = vmatprep.subr.bf16.mxu0 0
        %1746 = vmatpush1.bf16.msra.mxu0 0
        %1747 = vmatprep.mubr.bf16.mxu0 0
        %1748 = vmatmul.mubr.bf16.gmra.mrb[0].mxu0 %v1710
        %v1749 = vpop.f32.mrb[0].mxu0
        %v1750 = vadd.f32 0.0, %v1749
        %v1751 = vpop.f32.mrb[0].mxu0
        %v1752 = vpop.f32.mrb[0].mxu0
        %v1753 = vpop.f32.mrb[0].mxu0
        %1754 = vdwg.mxu0
        %v1756 = vsel %vm1191, %v1612, 0
        %v1759 = vsel %vm1419, %v1616, 0
        %1761 = vmatprep.subr.bf16.mxu0 0
        %1762 = vmatpush1.bf16.msra.mxu0 %v1759
        %1763 = vmatprep.subr.bf16.mxu0 0
        %1764 = vmatpush1.bf16.msra.mxu0 0
        %1765 = vmatprep.subr.bf16.mxu0 0
        %1766 = vmatpush1.bf16.msra.mxu0 0
        %1767 = vmatprep.subr.bf16.mxu0 0
        %1768 = vmatpush1.bf16.msra.mxu0 0
        %1769 = vmatprep.subr.bf16.mxu0 0
        %1770 = vmatpush1.bf16.msra.mxu0 0
        %1771 = vmatprep.subr.bf16.mxu0 0
        %1772 = vmatpush1.bf16.msra.mxu0 0
        %1773 = vmatprep.subr.bf16.mxu0 0
        %1774 = vmatpush1.bf16.msra.mxu0 0
        %1775 = vmatprep.subr.bf16.mxu0 0
        %1776 = vmatpush1.bf16.msra.mxu0 0
        %1777 = vmatprep.subr.bf16.mxu0 0
        %1778 = vmatpush1.bf16.msra.mxu0 0
        %1779 = vmatprep.subr.bf16.mxu0 0
        %1780 = vmatpush1.bf16.msra.mxu0 0
        %1781 = vmatprep.subr.bf16.mxu0 0
        %1782 = vmatpush1.bf16.msra.mxu0 0
        %1783 = vmatprep.subr.bf16.mxu0 0
        %1784 = vmatpush1.bf16.msra.mxu0 0
        %1785 = vmatprep.subr.bf16.mxu0 0
        %1786 = vmatpush1.bf16.msra.mxu0 0
        %1787 = vmatprep.subr.bf16.mxu0 0
        %1788 = vmatpush1.bf16.msra.mxu0 0
        %1789 = vmatprep.subr.bf16.mxu0 0
        %1790 = vmatpush1.bf16.msra.mxu0 0
        %1791 = vmatprep.subr.bf16.mxu0 0
        %1792 = vmatpush1.bf16.msra.mxu0 0
        %1793 = vmatprep.mubr.bf16.mxu0 0
        %1794 = vmatmul.mubr.bf16.gmra.mrb[0].mxu0 %v1756
        %v1795 = vpop.f32.mrb[0].mxu0
        %v1796 = vadd.f32 0.0, %v1795
        %v1797 = vpop.f32.mrb[0].mxu0
        %v1798 = vpop.f32.mrb[0].mxu0
        %v1799 = vpop.f32.mrb[0].mxu0
        %1800 = vdwg.mxu0
        %v1801 = vsel %vm384, %v1658, 0.0
        %v1802 = vsel %vm384, %v1704, 0.0
        %v1803 = vadd.f32 %v1801, %v1802
        %v1804 = vsel %vm384, %v1750, 0.0
        %v1805 = vadd.f32 %v1803, %v1804
        %v1806 = vsel %vm384, %v1796, 0.0
        %v1807 = vadd.f32 %v1805, %v1806
        %v1808 = vld [vmem:[%s10] sm:$0x1]
        %v1810 = vlaneseq
        %v1811 = vshrl.u32 %v1810, 7
        %v1812 = vsub.s32 0, %v1811
        %v1813 = vrot.slane %v1808, %v1812
        %v1815 = vadd.f32 %v1807, %v1813
        %1816 = vst.msk [vmem:[%s377] sm:$0xff] %vm384, %v1815
        %s1817 = sand.u32 %s269, 1
        %s1818 = scalar_lea.sflag [#allocation3], %s1817
        %s1819 = sand.u32 %s269, 1
        %s1820 = smul.addr %s1819, 8
        %s1821 = scalar_lea.vmem [#allocation2], %s1820
        // Predicated region
        $region65: #{tpu_custom_call.1} parent=63 // pred_check
          %p1822 = pneg %p279
        $region66: #{tpu_custom_call.1} parent=63 // pred_check_branch
          %1824 = sbr.rel (%p1822) target = $region68
        $region67: #{tpu_custom_call.1} parent=63 // pred_region
          %s1826 = ssub.s32 128, 128
          %1827 = vsyncadd %s1818, %s1826
          %s1828 = smul.addr %s25, 128
          %s1829 = scalar_lea.hbm %s11, %s1828
          %s1831 = sshll.u32 %s1821, 4
          %s1832 = int_to_ptr.vmem [resolvable:$true] %s1831
          %1834 = dma.vmem_to_hbm [thread:$0]  %s1832, 128, %s1829, %s1818
        $region68: #{tpu_custom_call.1} parent=63 // pred_fallthru
          _
      $region64: #{tpu_custom_call.1} parent=5 // pred_fallthru
        _
      %p1835 = scmp.le.s32.totalorder 2, %s20
      // Predicated region
      $region69: #{tpu_custom_call.1} parent=5 // pred_check
        %p1836 = pneg %p1835
      $region70: #{tpu_custom_call.1} parent=5 // pred_check_branch
        %1838 = sbr.rel (%p1836) target = $region72
      $region71: #{tpu_custom_call.1} parent=5 // pred_region
        %s1839 = ssub.s32 %s20, 2
        // Predicated region
        $region73: #{tpu_custom_call.1} parent=71 // pred_check
          %p1840 = pneg %p285
        $region74: #{tpu_custom_call.1} parent=71 // pred_check_branch
          %1842 = sbr.rel (%p1840) target = $region76
        $region75: #{tpu_custom_call.1} parent=71 // pred_region
          %s1843 = sand.u32 %s270, 1
          %s1844 = scalar_lea.sflag [#allocation3], %s1843
          %s1845 = sand.u32 %s270, 1
          %s1846 = smul.addr %s1845, 8
          %s1847 = scalar_lea.vmem [#allocation2], %s1846
          %1848 = dma.done %s1844, 128
        $region76: #{tpu_custom_call.1} parent=71 // pred_fallthru
          _
      $region72: #{tpu_custom_call.1} parent=5 // pred_fallthru
        _
    $region6: #{tpu_custom_call.1} parent=1 // loop_footer
      %s24 = sadd.s32 1, %s20
    $region7: #{tpu_custom_call.1} parent=1 // loop_footer_branch
      %19 = sbr.rel target = $region3
    $region8: #{tpu_custom_call.1} parent=1 // loop_exit
      _
    %1849 = vsyncpa [#allocation3], 1
    %s1850 = scalar_lea.sflag [#allocation3], 1
    %1851 = vsyncpa %s1850, 1

</llo_original>
